<compile_context>
chip_gen: v7x
topology: tpu7x:2x2x1
jax: 0.10.0
libtpu: 0.0.40
codegen_flags: <defaults>
</compile_context>

<pallas_src>
import functools

import jax
import jax.numpy as jnp
from jax.experimental import pallas as pl
from jax.experimental.pallas import tpu as pltpu


HIDDEN_PAD = 256  # 200 rounded up to a full lane group multiple


# ----------------------------------------------------------------------------
# Kernel: fused 5-layer MLP with ReLU between hidden layers.
# Weights arrive in bf16 (MXU operands), biases in f32; accumulation is f32
# and all element-wise work (bias add / ReLU) is done in f32.
# ----------------------------------------------------------------------------
def _mlp_kernel(x_ref,
                w1_ref, b1_ref,
                w2_ref, b2_ref,
                w3_ref, b3_ref,
                w4_ref, b4_ref,
                w5_ref, b5_ref,
                o_ref):
    mxu_dtype = w1_ref.dtype  # bfloat16

    h = x_ref[...].astype(mxu_dtype)

    h = jnp.dot(h, w1_ref[...], preferred_element_type=jnp.float32) + b1_ref[...]
    h = jnp.maximum(h, 0.0).astype(mxu_dtype)

    h = jnp.dot(h, w2_ref[...], preferred_element_type=jnp.float32) + b2_ref[...]
    h = jnp.maximum(h, 0.0).astype(mxu_dtype)

    h = jnp.dot(h, w3_ref[...], preferred_element_type=jnp.float32) + b3_ref[...]
    h = jnp.maximum(h, 0.0).astype(mxu_dtype)

    h = jnp.dot(h, w4_ref[...], preferred_element_type=jnp.float32) + b4_ref[...]
    h = jnp.maximum(h, 0.0).astype(mxu_dtype)

    y = jnp.dot(h, w5_ref[...], preferred_element_type=jnp.float32) + b5_ref[...]

    o_ref[...] = y.astype(o_ref.dtype)


# ----------------------------------------------------------------------------
# Parameter preparation: pad hidden width 200 -> 256 with zeros (exactly
# neutral through ReLU) and cast weights to bf16 (biases stay f32).
# Incoming params are (w, b) pairs with w as (in_features, out_features)
# (= PyTorch weight.T) and b as (1, out_features).
# ----------------------------------------------------------------------------
def _prepare_params(params, mxu_dtype=jnp.bfloat16):
    w1, b1, w2, b2, w3, b3, w4, b4, w5, b5 = params
    H = HIDDEN_PAD

    def pad_w(w, rows, cols):
        return jnp.pad(w, ((0, rows - w.shape[0]), (0, cols - w.shape[1])))

    def pad_b(b, cols):
        return jnp.pad(b, ((0, 0), (0, cols - b.shape[1])))

    w1p, b1p = pad_w(w1, w1.shape[0], H), pad_b(b1, H)
    w2p, b2p = pad_w(w2, H, H), pad_b(b2, H)
    w3p, b3p = pad_w(w3, H, H), pad_b(b3, H)
    w4p, b4p = pad_w(w4, H, H), pad_b(b4, H)
    w5p, b5p = pad_w(w5, H, w5.shape[1]), b5

    ws = [w.astype(mxu_dtype) for w in (w1p, w2p, w3p, w4p, w5p)]
    bs = [b.astype(jnp.float32) for b in (b1p, b2p, b3p, b4p, b5p)]
    return (ws[0], bs[0], ws[1], bs[1], ws[2], bs[2],
            ws[3], bs[3], ws[4], bs[4])


# ----------------------------------------------------------------------------
# Wrapper: pads the batch, sets up BlockSpecs / grid and calls the kernel.
# ----------------------------------------------------------------------------
@functools.partial(jax.jit, static_argnames=("batch_tile",))
def estimation_model_forward(x, params, batch_tile=256):
    """x: (B, 28) float32.  params: flat tuple (w1, b1, ..., w5, b5)."""
    B, D_in = x.shape
    prepared = _prepare_params(params)
    D_out = prepared[-1].shape[-1]  # 14

    # Ragged batch: pad up to a multiple of batch_tile, slice afterwards.
    n_tiles = pl.cdiv(B, batch_tile)
    B_pad = n_tiles * batch_tile
    x = x.astype(jnp.float32)
    if B_pad != B:
        x = jnp.pad(x, ((0, B_pad - B), (0, 0)))

    # Only x / out stream through the pipeline; parameters are resident VMEM.
    x_spec = pl.BlockSpec((batch_tile, D_in), lambda i: (i, 0))
    out_spec = pl.BlockSpec((batch_tile, D_out), lambda i: (i, 0))
    vmem_spec = pl.BlockSpec(memory_space=pltpu.MemorySpace.VMEM)
    param_specs = [vmem_spec] * len(prepared)

    out = pl.pallas_call(
        _mlp_kernel,
        out_shape=jax.ShapeDtypeStruct((B_pad, D_out), jnp.float32),
        grid_spec=pltpu.PrefetchScalarGridSpec(
            num_scalar_prefetch=0,
            grid=(n_tiles,),
            in_specs=[x_spec] + param_specs,
            out_specs=out_spec,
        ),
        compiler_params=pltpu.CompilerParams(
            dimension_semantics=("parallel",),
            vmem_limit_bytes=48 * 1024 * 1024,
        ),
    )(x, *prepared)

    return out[:B]


# ----------------------------------------------------------------------------
# Deterministic parameter init matching nn.Linear defaults:
# U(-1/sqrt(fan_in), 1/sqrt(fan_in)) for weights and biases.
# Weights stored as (in_features, out_features) = PyTorch weight.T.
# ----------------------------------------------------------------------------
def init_params(key):
    dims = [(28, 200), (200, 200), (200, 200), (200, 200), (200, 14)]
    params = []
    for (fan_in, fan_out) in dims:
        key, wk, bk = jax.random.split(key, 3)
        bound = 1.0 / jnp.sqrt(jnp.float32(fan_in))
        w = jax.random.uniform(wk, (fan_in, fan_out), jnp.float32,
                               minval=-bound, maxval=bound)
        b = jax.random.uniform(bk, (1, fan_out), jnp.float32,
                               minval=-bound, maxval=bound)
        params.extend([w, b])
    return tuple(params)


# ----------------------------------------------------------------------------
# Pure-JAX references.
# ----------------------------------------------------------------------------
def reference_forward_prepared(x, prepared):
    """Same bf16-weight / f32-accumulate math as the kernel (tight check)."""
    w1, b1, w2, b2, w3, b3, w4, b4, w5, b5 = prepared
    h = x.astype(w1.dtype)
    for w, b in ((w1, b1), (w2, b2), (w3, b3), (w4, b4)):
        h = jnp.dot(h, w, preferred_element_type=jnp.float32) + b
        h = jnp.maximum(h, 0.0).astype(w.dtype)
    return jnp.dot(h, w5, preferred_element_type=jnp.float32) + b5


def reference_forward_f32(x, params):
    """Original full-f32 semantics (loose check: bf16 weight rounding)."""
    w1, b1, w2, b2, w3, b3, w4, b4, w5, b5 = params
    h = jnp.maximum(x @ w1 + b1, 0.0)
    h = jnp.maximum(h @ w2 + b2, 0.0)
    h = jnp.maximum(h @ w3 + b3, 0.0)
    h = jnp.maximum(h @ w4 + b4, 0.0)
    return h @ w5 + b5


if __name__ == "__main__":
    key = jax.random.PRNGKey(0)
    pkey, xkey = jax.random.split(key)

    params = init_params(pkey)

    # Non-multiple of batch_tile to exercise ragged padding; pads to 512
    # -> 2 parallel grid steps (feeds both v7x TensorCores).
    B = 300
    x = jax.random.normal(xkey, (B, 28), jnp.float32)

    y = estimation_model_forward(x, params, batch_tile=256)
    y = jax.block_until_ready(y)
    assert y.shape == (B, 14)

    # Tight check against a reference using the exact same bf16/f32 dtypes.
    prepared = _prepare_params(params)
    y_ref = reference_forward_prepared(x, prepared)
    assert jnp.allclose(y, y_ref, atol=5e-3, rtol=5e-3), "mismatch vs bf16 reference"

    # Loose check against the original full-f32 math (bf16 weight rounding).
    y_f32 = reference_forward_f32(x, params)
    assert jnp.allclose(y, y_f32, atol=1e-1, rtol=1e-1), "mismatch vs f32 reference"

    print("KERNEL_OK")
</pallas_src>

<mosaic_0001>
module attributes {stable_mosaic.version = 11 : i64} {
  func.func @_mlp_kernel(%arg0: i32, %arg1: memref<256x28xf32, #tpu.memory_space<vmem>>, %arg2: memref<28x256xbf16, #tpu.memory_space<vmem>>, %arg3: memref<1x256xf32, #tpu.memory_space<vmem>>, %arg4: memref<256x256xbf16, #tpu.memory_space<vmem>>, %arg5: memref<1x256xf32, #tpu.memory_space<vmem>>, %arg6: memref<256x256xbf16, #tpu.memory_space<vmem>>, %arg7: memref<1x256xf32, #tpu.memory_space<vmem>>, %arg8: memref<256x256xbf16, #tpu.memory_space<vmem>>, %arg9: memref<1x256xf32, #tpu.memory_space<vmem>>, %arg10: memref<256x14xbf16, #tpu.memory_space<vmem>>, %arg11: memref<1x14xf32, #tpu.memory_space<vmem>>, %arg12: memref<256x14xf32, #tpu.memory_space<vmem>>) attributes {dimension_semantics = [#tpu.dimension_semantics<parallel>], iteration_bounds = array<i64: 2>, scalar_prefetch = 0 : i64, scratch_operands = 0 : i64, tpu.core_type = #tpu.core_type<tc>, window_params = [{transform_indices = @transform_0, window_bounds = array<i64: 256, 28>}, {pipeline_mode = #tpu.pipeline_mode<synchronous>, transform_indices = @transform_1, window_bounds = array<i64: 28, 256>}, {pipeline_mode = #tpu.pipeline_mode<synchronous>, transform_indices = @transform_2, window_bounds = array<i64: 1, 256>}, {pipeline_mode = #tpu.pipeline_mode<synchronous>, transform_indices = @transform_3, window_bounds = array<i64: 256, 256>}, {pipeline_mode = #tpu.pipeline_mode<synchronous>, transform_indices = @transform_4, window_bounds = array<i64: 1, 256>}, {pipeline_mode = #tpu.pipeline_mode<synchronous>, transform_indices = @transform_5, window_bounds = array<i64: 256, 256>}, {pipeline_mode = #tpu.pipeline_mode<synchronous>, transform_indices = @transform_6, window_bounds = array<i64: 1, 256>}, {pipeline_mode = #tpu.pipeline_mode<synchronous>, transform_indices = @transform_7, window_bounds = array<i64: 256, 256>}, {pipeline_mode = #tpu.pipeline_mode<synchronous>, transform_indices = @transform_8, window_bounds = array<i64: 1, 256>}, {pipeline_mode = #tpu.pipeline_mode<synchronous>, transform_indices = @transform_9, window_bounds = array<i64: 256, 14>}, {pipeline_mode = #tpu.pipeline_mode<synchronous>, transform_indices = @transform_10, window_bounds = array<i64: 1, 14>}, {transform_indices = @transform_11, window_bounds = array<i64: 256, 14>}]} {
    %c0 = arith.constant 0 : index
    %c0_0 = arith.constant 0 : index
    %0 = vector.load %arg1[%c0, %c0_0] : memref<256x28xf32, #tpu.memory_space<vmem>>, vector<256x28xf32>
    %1 = arith.truncf %0 : vector<256x28xf32> to vector<256x28xbf16>
    %c0_1 = arith.constant 0 : index
    %c0_2 = arith.constant 0 : index
    %2 = vector.load %arg2[%c0_1, %c0_2] : memref<28x256xbf16, #tpu.memory_space<vmem>>, vector<28x256xbf16>
    %cst = arith.constant dense<0.000000e+00> : vector<256x256xf32>
    %3 = tpu.matmul %1, %2, %cst {dimension_numbers = #tpu.dot_dimension_numbers<[1], [0], [0], [1], [0, 0, 1, 1], [], []>} : vector<256x28xbf16>, vector<28x256xbf16>, vector<256x256xf32> -> vector<256x256xf32>
    %c0_3 = arith.constant 0 : index
    %c0_4 = arith.constant 0 : index
    %4 = vector.load %arg3[%c0_3, %c0_4] : memref<1x256xf32, #tpu.memory_space<vmem>>, vector<1x256xf32>
    %5 = vector.broadcast %4 : vector<1x256xf32> to vector<256x256xf32>
    %6 = arith.addf %3, %5 : vector<256x256xf32>
    %cst_5 = arith.constant 0.000000e+00 : f32
    %7 = vector.broadcast %cst_5 : f32 to vector<256x256xf32>
    %8 = arith.maximumf %6, %7 : vector<256x256xf32>
    %9 = arith.truncf %8 : vector<256x256xf32> to vector<256x256xbf16>
    %c0_6 = arith.constant 0 : index
    %c0_7 = arith.constant 0 : index
    %10 = vector.load %arg4[%c0_6, %c0_7] : memref<256x256xbf16, #tpu.memory_space<vmem>>, vector<256x256xbf16>
    %cst_8 = arith.constant dense<0.000000e+00> : vector<256x256xf32>
    %11 = tpu.matmul %9, %10, %cst_8 {dimension_numbers = #tpu.dot_dimension_numbers<[1], [0], [0], [1], [0, 0, 1, 1], [], []>} : vector<256x256xbf16>, vector<256x256xbf16>, vector<256x256xf32> -> vector<256x256xf32>
    %c0_9 = arith.constant 0 : index
    %c0_10 = arith.constant 0 : index
    %12 = vector.load %arg5[%c0_9, %c0_10] : memref<1x256xf32, #tpu.memory_space<vmem>>, vector<1x256xf32>
    %13 = vector.broadcast %12 : vector<1x256xf32> to vector<256x256xf32>
    %14 = arith.addf %11, %13 : vector<256x256xf32>
    %cst_11 = arith.constant 0.000000e+00 : f32
    %15 = vector.broadcast %cst_11 : f32 to vector<256x256xf32>
    %16 = arith.maximumf %14, %15 : vector<256x256xf32>
    %17 = arith.truncf %16 : vector<256x256xf32> to vector<256x256xbf16>
    %c0_12 = arith.constant 0 : index
    %c0_13 = arith.constant 0 : index
    %18 = vector.load %arg6[%c0_12, %c0_13] : memref<256x256xbf16, #tpu.memory_space<vmem>>, vector<256x256xbf16>
    %cst_14 = arith.constant dense<0.000000e+00> : vector<256x256xf32>
    %19 = tpu.matmul %17, %18, %cst_14 {dimension_numbers = #tpu.dot_dimension_numbers<[1], [0], [0], [1], [0, 0, 1, 1], [], []>} : vector<256x256xbf16>, vector<256x256xbf16>, vector<256x256xf32> -> vector<256x256xf32>
    %c0_15 = arith.constant 0 : index
    %c0_16 = arith.constant 0 : index
    %20 = vector.load %arg7[%c0_15, %c0_16] : memref<1x256xf32, #tpu.memory_space<vmem>>, vector<1x256xf32>
    %21 = vector.broadcast %20 : vector<1x256xf32> to vector<256x256xf32>
    %22 = arith.addf %19, %21 : vector<256x256xf32>
    %cst_17 = arith.constant 0.000000e+00 : f32
    %23 = vector.broadcast %cst_17 : f32 to vector<256x256xf32>
    %24 = arith.maximumf %22, %23 : vector<256x256xf32>
    %25 = arith.truncf %24 : vector<256x256xf32> to vector<256x256xbf16>
    %c0_18 = arith.constant 0 : index
    %c0_19 = arith.constant 0 : index
    %26 = vector.load %arg8[%c0_18, %c0_19] : memref<256x256xbf16, #tpu.memory_space<vmem>>, vector<256x256xbf16>
    %cst_20 = arith.constant dense<0.000000e+00> : vector<256x256xf32>
    %27 = tpu.matmul %25, %26, %cst_20 {dimension_numbers = #tpu.dot_dimension_numbers<[1], [0], [0], [1], [0, 0, 1, 1], [], []>} : vector<256x256xbf16>, vector<256x256xbf16>, vector<256x256xf32> -> vector<256x256xf32>
    %c0_21 = arith.constant 0 : index
    %c0_22 = arith.constant 0 : index
    %28 = vector.load %arg9[%c0_21, %c0_22] : memref<1x256xf32, #tpu.memory_space<vmem>>, vector<1x256xf32>
    %29 = vector.broadcast %28 : vector<1x256xf32> to vector<256x256xf32>
    %30 = arith.addf %27, %29 : vector<256x256xf32>
    %cst_23 = arith.constant 0.000000e+00 : f32
    %31 = vector.broadcast %cst_23 : f32 to vector<256x256xf32>
    %32 = arith.maximumf %30, %31 : vector<256x256xf32>
    %33 = arith.truncf %32 : vector<256x256xf32> to vector<256x256xbf16>
    %c0_24 = arith.constant 0 : index
    %c0_25 = arith.constant 0 : index
    %34 = vector.load %arg10[%c0_24, %c0_25] : memref<256x14xbf16, #tpu.memory_space<vmem>>, vector<256x14xbf16>
    %cst_26 = arith.constant dense<0.000000e+00> : vector<256x14xf32>
    %35 = tpu.matmul %33, %34, %cst_26 {dimension_numbers = #tpu.dot_dimension_numbers<[1], [0], [0], [1], [0, 0, 1, 1], [], []>} : vector<256x256xbf16>, vector<256x14xbf16>, vector<256x14xf32> -> vector<256x14xf32>
    %c0_27 = arith.constant 0 : index
    %c0_28 = arith.constant 0 : index
    %36 = vector.load %arg11[%c0_27, %c0_28] : memref<1x14xf32, #tpu.memory_space<vmem>>, vector<1x14xf32>
    %37 = vector.broadcast %36 : vector<1x14xf32> to vector<256x14xf32>
    %38 = arith.addf %35, %37 : vector<256x14xf32>
    %c0_29 = arith.constant 0 : index
    %c0_30 = arith.constant 0 : index
    %39 = vector.load %arg12[%c0_29, %c0_30] : memref<256x14xf32, #tpu.memory_space<vmem>>, vector<256x14xf32>
    tpu.vector_store %arg12[%c0_29, %c0_30], %38 {strides = array<i32>} : memref<256x14xf32, #tpu.memory_space<vmem>>, vector<256x14xf32>,
    return
  }
  func.func @transform_0(%arg0: i32) -> (i32, i32) {
    %c0_i32 = arith.constant 0 : i32
    %c0_i32_0 = arith.constant 0 : i32
    return %arg0, %c0_i32 : i32, i32
  }
  func.func @transform_1(%arg0: i32) -> (i32, i32) {
    %c0_i32 = arith.constant 0 : i32
    %c0_i32_0 = arith.constant 0 : i32
    %c0_i32_1 = arith.constant 0 : i32
    return %c0_i32, %c0_i32_0 : i32, i32
  }
  func.func @transform_2(%arg0: i32) -> (i32, i32) {
    %c0_i32 = arith.constant 0 : i32
    %c0_i32_0 = arith.constant 0 : i32
    %c0_i32_1 = arith.constant 0 : i32
    return %c0_i32, %c0_i32_0 : i32, i32
  }
  func.func @transform_3(%arg0: i32) -> (i32, i32) {
    %c0_i32 = arith.constant 0 : i32
    %c0_i32_0 = arith.constant 0 : i32
    %c0_i32_1 = arith.constant 0 : i32
    return %c0_i32, %c0_i32_0 : i32, i32
  }
  func.func @transform_4(%arg0: i32) -> (i32, i32) {
    %c0_i32 = arith.constant 0 : i32
    %c0_i32_0 = arith.constant 0 : i32
    %c0_i32_1 = arith.constant 0 : i32
    return %c0_i32, %c0_i32_0 : i32, i32
  }
  func.func @transform_5(%arg0: i32) -> (i32, i32) {
    %c0_i32 = arith.constant 0 : i32
    %c0_i32_0 = arith.constant 0 : i32
    %c0_i32_1 = arith.constant 0 : i32
    return %c0_i32, %c0_i32_0 : i32, i32
  }
  func.func @transform_6(%arg0: i32) -> (i32, i32) {
    %c0_i32 = arith.constant 0 : i32
    %c0_i32_0 = arith.constant 0 : i32
    %c0_i32_1 = arith.constant 0 : i32
    return %c0_i32, %c0_i32_0 : i32, i32
  }
  func.func @transform_7(%arg0: i32) -> (i32, i32) {
    %c0_i32 = arith.constant 0 : i32
    %c0_i32_0 = arith.constant 0 : i32
    %c0_i32_1 = arith.constant 0 : i32
    return %c0_i32, %c0_i32_0 : i32, i32
  }
  func.func @transform_8(%arg0: i32) -> (i32, i32) {
    %c0_i32 = arith.constant 0 : i32
    %c0_i32_0 = arith.constant 0 : i32
    %c0_i32_1 = arith.constant 0 : i32
    return %c0_i32, %c0_i32_0 : i32, i32
  }
  func.func @transform_9(%arg0: i32) -> (i32, i32) {
    %c0_i32 = arith.constant 0 : i32
    %c0_i32_0 = arith.constant 0 : i32
    %c0_i32_1 = arith.constant 0 : i32
    return %c0_i32, %c0_i32_0 : i32, i32
  }
  func.func @transform_10(%arg0: i32) -> (i32, i32) {
    %c0_i32 = arith.constant 0 : i32
    %c0_i32_0 = arith.constant 0 : i32
    %c0_i32_1 = arith.constant 0 : i32
    return %c0_i32, %c0_i32_0 : i32, i32
  }
  func.func @transform_11(%arg0: i32) -> (i32, i32) {
    %c0_i32 = arith.constant 0 : i32
    %c0_i32_0 = arith.constant 0 : i32
    return %arg0, %c0_i32 : i32, i32
  }
}

</mosaic_0001>

<llo_original>
// kernel: estimation_model_forward.1
$region0: #{estimation_model_forward.1}
  #allocation0 [shape = 'u32[]', space=smem, size = 0x4, offset = 0x4, fixed_abs, tag = 'smem constant byte address 0x4 - core index']
  #allocation1 [shape = 'u32[144,128]{1,0:T(1,128)}', space=vmem, size = 0x12000, scoped, tag = 'internal scratch']
  %s0 = inlined_call_operand.vmem [shape: f32[512,28], index: 0, kind: input, shape index: {}]
  %s1 = inlined_call_operand.vmem [shape: bf16[28,256], index: 1, kind: input, shape index: {}]
  %s2 = inlined_call_operand.vmem [shape: f32[1,256], index: 2, kind: input, shape index: {}]
  %s3 = inlined_call_operand.vmem [shape: bf16[256,256], index: 3, kind: input, shape index: {}]
  %s4 = inlined_call_operand.vmem [shape: f32[1,256], index: 4, kind: input, shape index: {}]
  %s5 = inlined_call_operand.vmem [shape: bf16[256,256], index: 5, kind: input, shape index: {}]
  %s6 = inlined_call_operand.vmem [shape: f32[1,256], index: 6, kind: input, shape index: {}]
  %s7 = inlined_call_operand.vmem [shape: bf16[256,256], index: 7, kind: input, shape index: {}]
  %s8 = inlined_call_operand.vmem [shape: f32[1,256], index: 8, kind: input, shape index: {}]
  %s9 = inlined_call_operand.vmem [shape: bf16[256,14], index: 9, kind: input, shape index: {}]
  %s10 = inlined_call_operand.vmem [shape: f32[1,14], index: 10, kind: input, shape index: {}]
  %s11 = inlined_call_operand.vmem [shape: f32[512,14], index: 11, kind: output, shape index: {}]
  %s12 = sld [smem:[#allocation0]]
  $region77: #{estimation_model_forward.1} parent=0
    _
  %s14 = ssub.s32 1, %s12
  %s15 = scalar_select 0, %s14, %s12
  loop: start=0, step=1, limit=4
  $region2: #{estimation_model_forward.1} parent=0 // loop_pre_header
    _
  $region3: #{estimation_model_forward.1} parent=0 // loop_header
    %s17 = sphi 0, %s21
    %p18 = scmp.ge.s32.totalorder %s17, 4
    %s27 = sphi 0, %s29
    %s30 = sphi 0, %s27
    %s31 = sphi 0, %s30
    %s47 = sphi 0, %s31
    %s51 = sphi 0, %s51
    %s53 = sphi 0, %s51
    %s54 = sphi 0, %s53
    %s68 = sphi 0, %s54
    %s72 = sphi 0, %s72
    %s74 = sphi 0, %s72
    %s75 = sphi 0, %s74
    %s89 = sphi 0, %s75
    %s93 = sphi 0, %s93
    %s95 = sphi 0, %s93
    %s96 = sphi 0, %s95
    %s110 = sphi 0, %s96
    %s114 = sphi 0, %s114
    %s116 = sphi 0, %s114
    %s117 = sphi 0, %s116
    %s131 = sphi 0, %s117
    %s135 = sphi 0, %s135
    %s137 = sphi 0, %s135
    %s138 = sphi 0, %s137
    %s152 = sphi 0, %s138
    %s156 = sphi 0, %s156
    %s158 = sphi 0, %s156
    %s159 = sphi 0, %s158
    %s173 = sphi 0, %s159
    %s177 = sphi 0, %s177
    %s179 = sphi 0, %s177
    %s180 = sphi 0, %s179
    %s194 = sphi 0, %s180
    %s198 = sphi 0, %s198
    %s200 = sphi 0, %s198
    %s201 = sphi 0, %s200
    %s215 = sphi 0, %s201
    %s219 = sphi 0, %s219
    %s221 = sphi 0, %s219
    %s222 = sphi 0, %s221
    %s236 = sphi 0, %s222
    %s240 = sphi 0, %s240
    %s242 = sphi 0, %s240
    %s243 = sphi 0, %s242
    %s257 = sphi 0, %s243
    %s263 = sphi 0, %s265
    %s266 = sphi 0, %s263
    %s267 = sphi 0, %s266
    %s283 = sphi 0, %s267
  $region4: #{estimation_model_forward.1} parent=0 // loop_header_branch
    %20 = sbr.rel (%p18) target = $region8
  $region5: #{estimation_model_forward.1} parent=0 // loop_body
    %s22 = ssub.s32 %s17, 1
    %s23 = ssub.s32 %s17, 2
    %s24 = sadd.s32 %s17, 1
    %s25 = ssub.s32 %s17, %s24
    %p26 = scmp.eq.s32.totalorder %s25, 0
    %s28 = sadd.s32 %s27, 1
    %s29 = scalar_select %p26, %s27, %s28
    %p32 = pneg %p26
    %p33 = scmp.eq.s32.totalorder %s17, 1
    %p34 = por %p32, %p33
    %p35 = scmp.ne.s32.totalorder %s27, %s30
    %p36 = scmp.eq.s32.totalorder %s17, 0
    %p37 = por %p35, %p36
    %p38 = scmp.ne.s32.totalorder %s27, %s30
    %p39 = scmp.eq.s32.totalorder %s22, 1
    %p40 = por %p38, %p39
    %p41 = scmp.ne.s32.totalorder %s30, %s31
    %p42 = scmp.eq.s32.totalorder %s22, 0
    %p43 = por %p41, %p42
    %p44 = scmp.ne.s32.totalorder %s30, %s31
    %p45 = scmp.eq.s32.totalorder %s23, 1
    %p46 = por %p44, %p45
    %p48 = scmp.ne.s32.totalorder %s31, %s47
    %p49 = scmp.eq.s32.totalorder %s23, 0
    %p50 = por %p48, %p49
    %s52 = sadd.s32 %s51, 1
    %p55 = scmp.eq.s32.totalorder %s17, 1
    %p56 = scmp.ne.s32.totalorder %s51, %s53
    %p57 = scmp.eq.s32.totalorder %s17, 0
    %p58 = por %p56, %p57
    %p59 = scmp.ne.s32.totalorder %s51, %s53
    %p60 = scmp.eq.s32.totalorder %s22, 1
    %p61 = por %p59, %p60
    %p62 = scmp.ne.s32.totalorder %s53, %s54
    %p63 = scmp.eq.s32.totalorder %s22, 0
    %p64 = por %p62, %p63
    %p65 = scmp.ne.s32.totalorder %s53, %s54
    %p66 = scmp.eq.s32.totalorder %s23, 1
    %p67 = por %p65, %p66
    %p69 = scmp.ne.s32.totalorder %s54, %s68
    %p70 = scmp.eq.s32.totalorder %s23, 0
    %p71 = por %p69, %p70
    %s73 = sadd.s32 %s72, 1
    %p76 = scmp.eq.s32.totalorder %s17, 1
    %p77 = scmp.ne.s32.totalorder %s72, %s74
    %p78 = scmp.eq.s32.totalorder %s17, 0
    %p79 = por %p77, %p78
    %p80 = scmp.ne.s32.totalorder %s72, %s74
    %p81 = scmp.eq.s32.totalorder %s22, 1
    %p82 = por %p80, %p81
    %p83 = scmp.ne.s32.totalorder %s74, %s75
    %p84 = scmp.eq.s32.totalorder %s22, 0
    %p85 = por %p83, %p84
    %p86 = scmp.ne.s32.totalorder %s74, %s75
    %p87 = scmp.eq.s32.totalorder %s23, 1
    %p88 = por %p86, %p87
    %p90 = scmp.ne.s32.totalorder %s75, %s89
    %p91 = scmp.eq.s32.totalorder %s23, 0
    %p92 = por %p90, %p91
    %s94 = sadd.s32 %s93, 1
    %p97 = scmp.eq.s32.totalorder %s17, 1
    %p98 = scmp.ne.s32.totalorder %s93, %s95
    %p99 = scmp.eq.s32.totalorder %s17, 0
    %p100 = por %p98, %p99
    %p101 = scmp.ne.s32.totalorder %s93, %s95
    %p102 = scmp.eq.s32.totalorder %s22, 1
    %p103 = por %p101, %p102
    %p104 = scmp.ne.s32.totalorder %s95, %s96
    %p105 = scmp.eq.s32.totalorder %s22, 0
    %p106 = por %p104, %p105
    %p107 = scmp.ne.s32.totalorder %s95, %s96
    %p108 = scmp.eq.s32.totalorder %s23, 1
    %p109 = por %p107, %p108
    %p111 = scmp.ne.s32.totalorder %s96, %s110
    %p112 = scmp.eq.s32.totalorder %s23, 0
    %p113 = por %p111, %p112
    %s115 = sadd.s32 %s114, 1
    %p118 = scmp.eq.s32.totalorder %s17, 1
    %p119 = scmp.ne.s32.totalorder %s114, %s116
    %p120 = scmp.eq.s32.totalorder %s17, 0
    %p121 = por %p119, %p120
    %p122 = scmp.ne.s32.totalorder %s114, %s116
    %p123 = scmp.eq.s32.totalorder %s22, 1
    %p124 = por %p122, %p123
    %p125 = scmp.ne.s32.totalorder %s116, %s117
    %p126 = scmp.eq.s32.totalorder %s22, 0
    %p127 = por %p125, %p126
    %p128 = scmp.ne.s32.totalorder %s116, %s117
    %p129 = scmp.eq.s32.totalorder %s23, 1
    %p130 = por %p128, %p129
    %p132 = scmp.ne.s32.totalorder %s117, %s131
    %p133 = scmp.eq.s32.totalorder %s23, 0
    %p134 = por %p132, %p133
    %s136 = sadd.s32 %s135, 1
    %p139 = scmp.eq.s32.totalorder %s17, 1
    %p140 = scmp.ne.s32.totalorder %s135, %s137
    %p141 = scmp.eq.s32.totalorder %s17, 0
    %p142 = por %p140, %p141
    %p143 = scmp.ne.s32.totalorder %s135, %s137
    %p144 = scmp.eq.s32.totalorder %s22, 1
    %p145 = por %p143, %p144
    %p146 = scmp.ne.s32.totalorder %s137, %s138
    %p147 = scmp.eq.s32.totalorder %s22, 0
    %p148 = por %p146, %p147
    %p149 = scmp.ne.s32.totalorder %s137, %s138
    %p150 = scmp.eq.s32.totalorder %s23, 1
    %p151 = por %p149, %p150
    %p153 = scmp.ne.s32.totalorder %s138, %s152
    %p154 = scmp.eq.s32.totalorder %s23, 0
    %p155 = por %p153, %p154
    %s157 = sadd.s32 %s156, 1
    %p160 = scmp.eq.s32.totalorder %s17, 1
    %p161 = scmp.ne.s32.totalorder %s156, %s158
    %p162 = scmp.eq.s32.totalorder %s17, 0
    %p163 = por %p161, %p162
    %p164 = scmp.ne.s32.totalorder %s156, %s158
    %p165 = scmp.eq.s32.totalorder %s22, 1
    %p166 = por %p164, %p165
    %p167 = scmp.ne.s32.totalorder %s158, %s159
    %p168 = scmp.eq.s32.totalorder %s22, 0
    %p169 = por %p167, %p168
    %p170 = scmp.ne.s32.totalorder %s158, %s159
    %p171 = scmp.eq.s32.totalorder %s23, 1
    %p172 = por %p170, %p171
    %p174 = scmp.ne.s32.totalorder %s159, %s173
    %p175 = scmp.eq.s32.totalorder %s23, 0
    %p176 = por %p174, %p175
    %s178 = sadd.s32 %s177, 1
    %p181 = scmp.eq.s32.totalorder %s17, 1
    %p182 = scmp.ne.s32.totalorder %s177, %s179
    %p183 = scmp.eq.s32.totalorder %s17, 0
    %p184 = por %p182, %p183
    %p185 = scmp.ne.s32.totalorder %s177, %s179
    %p186 = scmp.eq.s32.totalorder %s22, 1
    %p187 = por %p185, %p186
    %p188 = scmp.ne.s32.totalorder %s179, %s180
    %p189 = scmp.eq.s32.totalorder %s22, 0
    %p190 = por %p188, %p189
    %p191 = scmp.ne.s32.totalorder %s179, %s180
    %p192 = scmp.eq.s32.totalorder %s23, 1
    %p193 = por %p191, %p192
    %p195 = scmp.ne.s32.totalorder %s180, %s194
    %p196 = scmp.eq.s32.totalorder %s23, 0
    %p197 = por %p195, %p196
    %s199 = sadd.s32 %s198, 1
    %p202 = scmp.eq.s32.totalorder %s17, 1
    %p203 = scmp.ne.s32.totalorder %s198, %s200
    %p204 = scmp.eq.s32.totalorder %s17, 0
    %p205 = por %p203, %p204
    %p206 = scmp.ne.s32.totalorder %s198, %s200
    %p207 = scmp.eq.s32.totalorder %s22, 1
    %p208 = por %p206, %p207
    %p209 = scmp.ne.s32.totalorder %s200, %s201
    %p210 = scmp.eq.s32.totalorder %s22, 0
    %p211 = por %p209, %p210
    %p212 = scmp.ne.s32.totalorder %s200, %s201
    %p213 = scmp.eq.s32.totalorder %s23, 1
    %p214 = por %p212, %p213
    %p216 = scmp.ne.s32.totalorder %s201, %s215
    %p217 = scmp.eq.s32.totalorder %s23, 0
    %p218 = por %p216, %p217
    %s220 = sadd.s32 %s219, 1
    %p223 = scmp.eq.s32.totalorder %s17, 1
    %p224 = scmp.ne.s32.totalorder %s219, %s221
    %p225 = scmp.eq.s32.totalorder %s17, 0
    %p226 = por %p224, %p225
    %p227 = scmp.ne.s32.totalorder %s219, %s221
    %p228 = scmp.eq.s32.totalorder %s22, 1
    %p229 = por %p227, %p228
    %p230 = scmp.ne.s32.totalorder %s221, %s222
    %p231 = scmp.eq.s32.totalorder %s22, 0
    %p232 = por %p230, %p231
    %p233 = scmp.ne.s32.totalorder %s221, %s222
    %p234 = scmp.eq.s32.totalorder %s23, 1
    %p235 = por %p233, %p234
    %p237 = scmp.ne.s32.totalorder %s222, %s236
    %p238 = scmp.eq.s32.totalorder %s23, 0
    %p239 = por %p237, %p238
    %s241 = sadd.s32 %s240, 1
    %p244 = scmp.eq.s32.totalorder %s17, 1
    %p245 = scmp.ne.s32.totalorder %s240, %s242
    %p246 = scmp.eq.s32.totalorder %s17, 0
    %p247 = por %p245, %p246
    %p248 = scmp.ne.s32.totalorder %s240, %s242
    %p249 = scmp.eq.s32.totalorder %s22, 1
    %p250 = por %p248, %p249
    %p251 = scmp.ne.s32.totalorder %s242, %s243
    %p252 = scmp.eq.s32.totalorder %s22, 0
    %p253 = por %p251, %p252
    %p254 = scmp.ne.s32.totalorder %s242, %s243
    %p255 = scmp.eq.s32.totalorder %s23, 1
    %p256 = por %p254, %p255
    %p258 = scmp.ne.s32.totalorder %s243, %s257
    %p259 = scmp.eq.s32.totalorder %s23, 0
    %p260 = por %p258, %p259
    %s261 = ssub.s32 %s17, %s24
    %p262 = scmp.eq.s32.totalorder %s261, 0
    %s264 = sadd.s32 %s263, 1
    %s265 = scalar_select %p262, %s263, %s264
    %p268 = pneg %p262
    %p269 = scmp.eq.s32.totalorder %s17, 1
    %p270 = por %p268, %p269
    %p271 = scmp.ne.s32.totalorder %s263, %s266
    %p272 = scmp.eq.s32.totalorder %s17, 0
    %p273 = por %p271, %p272
    %p274 = scmp.ne.s32.totalorder %s263, %s266
    %p275 = scmp.eq.s32.totalorder %s22, 1
    %p276 = por %p274, %p275
    %p277 = scmp.ne.s32.totalorder %s266, %s267
    %p278 = scmp.eq.s32.totalorder %s22, 0
    %p279 = por %p277, %p278
    %p280 = scmp.ne.s32.totalorder %s266, %s267
    %p281 = scmp.eq.s32.totalorder %s23, 1
    %p282 = por %p280, %p281
    %p284 = scmp.ne.s32.totalorder %s267, %s283
    %p285 = scmp.eq.s32.totalorder %s23, 0
    %p286 = por %p284, %p285
    %p287 = scmp.le.s32.totalorder 1, %s17
    %p288 = scmp.lt.s32.totalorder %s17, 3
    %p289 = pnand %p287, %p288
    %p290 = pneg %p289
    // Predicated region
    $region9: #{estimation_model_forward.1} parent=5 // pred_check
      _
    $region10: #{estimation_model_forward.1} parent=5 // pred_check_branch
      %292 = sbr.rel (%p289) target = $region12
    $region11: #{estimation_model_forward.1} parent=5 // pred_region
      %s293 = ssub.s32 %s17, 1
      // Predicated region
      $region13: #{estimation_model_forward.1} parent=11 // pred_check
        %p294 = pneg %p64
      $region14: #{estimation_model_forward.1} parent=11 // pred_check_branch
        %296 = sbr.rel (%p294) target = $region16
      $region15: #{estimation_model_forward.1} parent=11 // pred_region
        _
      $region16: #{estimation_model_forward.1} parent=11 // pred_fallthru
        _
      // Predicated region
      $region17: #{estimation_model_forward.1} parent=11 // pred_check
        %p297 = pneg %p85
      $region18: #{estimation_model_forward.1} parent=11 // pred_check_branch
        %299 = sbr.rel (%p297) target = $region20
      $region19: #{estimation_model_forward.1} parent=11 // pred_region
        _
      $region20: #{estimation_model_forward.1} parent=11 // pred_fallthru
        _
      // Predicated region
      $region21: #{estimation_model_forward.1} parent=11 // pred_check
        %p300 = pneg %p106
      $region22: #{estimation_model_forward.1} parent=11 // pred_check_branch
        %302 = sbr.rel (%p300) target = $region24
      $region23: #{estimation_model_forward.1} parent=11 // pred_region
        _
      $region24: #{estimation_model_forward.1} parent=11 // pred_fallthru
        _
      // Predicated region
      $region25: #{estimation_model_forward.1} parent=11 // pred_check
        %p303 = pneg %p127
      $region26: #{estimation_model_forward.1} parent=11 // pred_check_branch
        %305 = sbr.rel (%p303) target = $region28
      $region27: #{estimation_model_forward.1} parent=11 // pred_region
        _
      $region28: #{estimation_model_forward.1} parent=11 // pred_fallthru
        _
      // Predicated region
      $region29: #{estimation_model_forward.1} parent=11 // pred_check
        %p306 = pneg %p148
      $region30: #{estimation_model_forward.1} parent=11 // pred_check_branch
        %308 = sbr.rel (%p306) target = $region32
      $region31: #{estimation_model_forward.1} parent=11 // pred_region
        _
      $region32: #{estimation_model_forward.1} parent=11 // pred_fallthru
        _
      // Predicated region
      $region33: #{estimation_model_forward.1} parent=11 // pred_check
        %p309 = pneg %p169
      $region34: #{estimation_model_forward.1} parent=11 // pred_check_branch
        %311 = sbr.rel (%p309) target = $region36
      $region35: #{estimation_model_forward.1} parent=11 // pred_region
        _
      $region36: #{estimation_model_forward.1} parent=11 // pred_fallthru
        _
      // Predicated region
      $region37: #{estimation_model_forward.1} parent=11 // pred_check
        %p312 = pneg %p190
      $region38: #{estimation_model_forward.1} parent=11 // pred_check_branch
        %314 = sbr.rel (%p312) target = $region40
      $region39: #{estimation_model_forward.1} parent=11 // pred_region
        _
      $region40: #{estimation_model_forward.1} parent=11 // pred_fallthru
        _
      // Predicated region
      $region41: #{estimation_model_forward.1} parent=11 // pred_check
        %p315 = pneg %p211
      $region42: #{estimation_model_forward.1} parent=11 // pred_check_branch
        %317 = sbr.rel (%p315) target = $region44
      $region43: #{estimation_model_forward.1} parent=11 // pred_region
        _
      $region44: #{estimation_model_forward.1} parent=11 // pred_fallthru
        _
      // Predicated region
      $region45: #{estimation_model_forward.1} parent=11 // pred_check
        %p318 = pneg %p232
      $region46: #{estimation_model_forward.1} parent=11 // pred_check_branch
        %320 = sbr.rel (%p318) target = $region48
      $region47: #{estimation_model_forward.1} parent=11 // pred_region
        _
      $region48: #{estimation_model_forward.1} parent=11 // pred_fallthru
        _
      // Predicated region
      $region49: #{estimation_model_forward.1} parent=11 // pred_check
        %p321 = pneg %p253
      $region50: #{estimation_model_forward.1} parent=11 // pred_check_branch
        %323 = sbr.rel (%p321) target = $region52
      $region51: #{estimation_model_forward.1} parent=11 // pred_region
        _
      $region52: #{estimation_model_forward.1} parent=11 // pred_fallthru
        _
    $region12: #{estimation_model_forward.1} parent=5 // pred_fallthru
      _
    %p324 = scmp.lt.s32.totalorder %s17, 2
    // Predicated region
    $region53: #{estimation_model_forward.1} parent=5 // pred_check
      %p325 = pneg %p324
    $region54: #{estimation_model_forward.1} parent=5 // pred_check_branch
      %327 = sbr.rel (%p325) target = $region56
    $region55: #{estimation_model_forward.1} parent=5 // pred_region
      // Predicated region
      $region57: #{estimation_model_forward.1} parent=55 // pred_check
        %p328 = pneg %p37
      $region58: #{estimation_model_forward.1} parent=55 // pred_check_branch
        %330 = sbr.rel (%p328) target = $region60
      $region59: #{estimation_model_forward.1} parent=55 // pred_region
        %s331 = smul.u32 32, %s17
        %p332 = scmp.lt.s32.totalorder %s331, 63
        %s333 = scalar_select %p332, %s331, 63
        %s334 = smul.addr %s333, 8
        %s335 = scalar_lea.vmem %s0, %s334
        %s336 = smul.u32 32, %s17
      $region60: #{estimation_model_forward.1} parent=55 // pred_fallthru
        _
    $region56: #{estimation_model_forward.1} parent=5 // pred_fallthru
      _
    %p337 = scmp.le.s32.totalorder 1, %s17
    %p338 = scmp.lt.s32.totalorder %s17, 3
    %p339 = pnand %p337, %p338
    %p340 = pneg %p339
    // Predicated region
    $region61: #{estimation_model_forward.1} parent=5 // pred_check
      _
    $region62: #{estimation_model_forward.1} parent=5 // pred_check_branch
      %342 = sbr.rel (%p339) target = $region64
    $region63: #{estimation_model_forward.1} parent=5 // pred_region
      %s343 = ssub.s32 %s17, 1
      %s344 = smul.u32 32, %s22
      %p345 = scmp.lt.s32.totalorder %s344, 63
      %s346 = scalar_select %p345, %s344, 63
      %s347 = smul.addr %s346, 8
      %s348 = scalar_lea.vmem %s0, %s347
      %p349 = pneg %p43
      %p350 = pneg %p40
      %p351 = pneg %p64
      %p352 = pneg %p61
      %p353 = pneg %p85
      %p354 = pneg %p82
      %p355 = pneg %p106
      %p356 = pneg %p103
      %p357 = pneg %p127
      %p358 = pneg %p124
      %p359 = pneg %p148
      %p360 = pneg %p145
      %p361 = pneg %p169
      %p362 = pneg %p166
      %p363 = pneg %p190
      %p364 = pneg %p187
      %p365 = pneg %p211
      %p366 = pneg %p208
      %p367 = pneg %p232
      %p368 = pneg %p229
      %p369 = pneg %p253
      %p370 = pneg %p250
      %p371 = pneg %p279
      %p372 = pneg %p276
      %s373 = smul.u32 32, %s22
      %p374 = scmp.lt.s32.totalorder %s373, 63
      %s375 = scalar_select %p374, %s373, 63
      %s376 = smul.addr %s375, 8
      %s377 = scalar_lea.vmem %s11, %s376
      %s378 = smul.u32 32, %s22
      %p379 = scmp.lt.s32.totalorder %s378, 63
      %s380 = scalar_select %p379, %s378, 63
      %s381 = smul.addr %s380, 8
      %s382 = scalar_lea.vmem %s0, %s381
      %s383 = smul.u32 32, %s22
      %s384 = smul.u32 32, %s22
      %p385 = scmp.lt.s32.totalorder %s384, 63
      %s386 = scalar_select %p385, %s384, 63
      %s387 = smul.addr %s386, 8
      %s388 = scalar_lea.vmem %s11, %s387
      %s389 = smul.u32 32, %s22
      %v391 = vld [vmem:[%s382] sm:$0xff]
      %v392 = vld [vmem:[%s382 + $0x8] sm:$0xff]
      %v393 = vld [vmem:[%s382 + $0x10] sm:$0xff]
      %v394 = vld [vmem:[%s382 + $0x18] sm:$0xff]
      %v395 = vld [vmem:[%s382 + $0x20] sm:$0xff]
      %v396 = vld [vmem:[%s382 + $0x28] sm:$0xff]
      %v397 = vld [vmem:[%s382 + $0x30] sm:$0xff]
      %v398 = vld [vmem:[%s382 + $0x38] sm:$0xff]
      %v399 = vld [vmem:[%s382 + $0x40] sm:$0xff]
      %v400 = vld [vmem:[%s382 + $0x48] sm:$0xff]
      %v401 = vld [vmem:[%s382 + $0x50] sm:$0xff]
      %v402 = vld [vmem:[%s382 + $0x58] sm:$0xff]
      %v403 = vld [vmem:[%s382 + $0x60] sm:$0xff]
      %v404 = vld [vmem:[%s382 + $0x68] sm:$0xff]
      %v405 = vld [vmem:[%s382 + $0x70] sm:$0xff]
      %v406 = vld [vmem:[%s382 + $0x78] sm:$0xff]
      %v407 = vld [vmem:[%s382 + $0x80] sm:$0xff]
      %v408 = vld [vmem:[%s382 + $0x88] sm:$0xff]
      %v409 = vld [vmem:[%s382 + $0x90] sm:$0xff]
      %v410 = vld [vmem:[%s382 + $0x98] sm:$0xff]
      %v411 = vld [vmem:[%s382 + $0xa0] sm:$0xff]
      %v412 = vld [vmem:[%s382 + $0xa8] sm:$0xff]
      %v413 = vld [vmem:[%s382 + $0xb0] sm:$0xff]
      %v414 = vld [vmem:[%s382 + $0xb8] sm:$0xff]
      %v415 = vld [vmem:[%s382 + $0xc0] sm:$0xff]
      %v416 = vld [vmem:[%s382 + $0xc8] sm:$0xff]
      %v417 = vld [vmem:[%s382 + $0xd0] sm:$0xff]
      %v418 = vld [vmem:[%s382 + $0xd8] sm:$0xff]
      %v419 = vld [vmem:[%s382 + $0xe0] sm:$0xff]
      %v420 = vld [vmem:[%s382 + $0xe8] sm:$0xff]
      %v421 = vld [vmem:[%s382 + $0xf0] sm:$0xff]
      %v422 = vld [vmem:[%s382 + $0xf8] sm:$0xff]
      %v423 = vpack.c.bf16 %v392, %v391
      %v424 = vpack.c.bf16 %v394, %v393
      %v425 = vpack.c.bf16 %v396, %v395
      %v426 = vpack.c.bf16 %v398, %v397
      %v427 = vpack.c.bf16 %v400, %v399
      %v428 = vpack.c.bf16 %v402, %v401
      %v429 = vpack.c.bf16 %v404, %v403
      %v430 = vpack.c.bf16 %v406, %v405
      %v431 = vpack.c.bf16 %v408, %v407
      %v432 = vpack.c.bf16 %v410, %v409
      %v433 = vpack.c.bf16 %v412, %v411
      %v434 = vpack.c.bf16 %v414, %v413
      %v435 = vpack.c.bf16 %v416, %v415
      %v436 = vpack.c.bf16 %v418, %v417
      %v437 = vpack.c.bf16 %v420, %v419
      %v438 = vpack.c.bf16 %v422, %v421
      %v439 = vld [vmem:[%s1] sm:$0xff]
      %v440 = vld [vmem:[%s1 + $0x8] sm:$0xff]
      %v441 = vld [vmem:[%s1 + $0x10] sm:$0xff]
      %v442 = vld [vmem:[%s1 + $0x18] sm:$0x33]
      %v443 = vld [vmem:[%s2] sm:$0x3]
      %v445 = vlaneseq
      %v446 = vshrl.u32 %v445, 7
      %v447 = vsub.s32 0, %v446
      %v448 = vrot.slane %v443, %v447
      %v449 = vlaneseq
      %v450 = vshrl.u32 %v449, 7
      %v451 = vsub.s32 1, %v450
      %v452 = vrot.slane %v443, %v451
      %v459 = vunpack.c.l.b16 %v439
      %v460 = vunpack.c.h.b16 %v439
      %v461 = vunpack.c.l.b16 %v440
      %v462 = vunpack.c.h.b16 %v440
      %v463 = vunpack.c.l.b16 %v441
      %v464 = vunpack.c.h.b16 %v441
      %v465 = vunpack.c.l.b16 %v442
      %v466 = vunpack.c.h.b16 %v442
      %v467 = vpack.c.b16 %v461, %v459
      %v468 = vpack.c.b16 %v462, %v460
      %v469 = vpack.c.b16 %v465, %v463
      %v470 = vpack.c.b16 %v466, %v464
      %vm473 = vcmask 228352
      %v475 = vsel %vm473, %v423, 0
      %v478 = vsel %vm473, %v424, 0
      %v481 = vsel %vm473, %v425, 0
      %v484 = vsel %vm473, %v426, 0
      %v487 = vsel %vm473, %v427, 0
      %v490 = vsel %vm473, %v428, 0
      %v493 = vsel %vm473, %v429, 0
      %v496 = vsel %vm473, %v430, 0
      %v499 = vsel %vm473, %v431, 0
      %v502 = vsel %vm473, %v432, 0
      %v505 = vsel %vm473, %v433, 0
      %v508 = vsel %vm473, %v434, 0
      %v511 = vsel %vm473, %v435, 0
      %v514 = vsel %vm473, %v436, 0
      %v517 = vsel %vm473, %v437, 0
      %v520 = vsel %vm473, %v438, 0
      %vm522 = vcmask 1045504
      %v524 = vsel %vm522, %v469, 0
      %v527 = vsel %vm522, %v470, 0
      %529 = vmatprep.subr.bf16.mxu0 %v468
      %530 = vmatpush1.bf16.msra.mxu0 %v467
      %531 = vmatprep.subr.bf16.mxu0 %v527
      %532 = vmatpush1.bf16.msra.mxu0 %v524
      %533 = vmatprep.subr.bf16.mxu0 0
      %534 = vmatpush1.bf16.msra.mxu0 0
      %535 = vmatprep.subr.bf16.mxu0 0
      %536 = vmatpush1.bf16.msra.mxu0 0
      %537 = vmatprep.subr.bf16.mxu0 0
      %538 = vmatpush1.bf16.msra.mxu0 0
      %539 = vmatprep.subr.bf16.mxu0 0
      %540 = vmatpush1.bf16.msra.mxu0 0
      %541 = vmatprep.subr.bf16.mxu0 0
      %542 = vmatpush1.bf16.msra.mxu0 0
      %543 = vmatprep.subr.bf16.mxu0 0
      %544 = vmatpush1.bf16.msra.mxu0 0
      %545 = vmatprep.subr.bf16.mxu0 0
      %546 = vmatpush1.bf16.msra.mxu0 0
      %547 = vmatprep.subr.bf16.mxu0 0
      %548 = vmatpush1.bf16.msra.mxu0 0
      %549 = vmatprep.subr.bf16.mxu0 0
      %550 = vmatpush1.bf16.msra.mxu0 0
      %551 = vmatprep.subr.bf16.mxu0 0
      %552 = vmatpush1.bf16.msra.mxu0 0
      %553 = vmatprep.subr.bf16.mxu0 0
      %554 = vmatpush1.bf16.msra.mxu0 0
      %555 = vmatprep.subr.bf16.mxu0 0
      %556 = vmatpush1.bf16.msra.mxu0 0
      %557 = vmatprep.subr.bf16.mxu0 0
      %558 = vmatpush1.bf16.msra.mxu0 0
      %559 = vmatprep.subr.bf16.mxu0 0
      %560 = vmatpush1.bf16.msra.mxu0 0
      %561 = vmatprep.mubr.bf16.mxu0 0
      %562 = vmatmul.mubr.bf16.gmra.mrb[0].mxu0 %v475
      %v563 = vpop.f32.mrb[0].mxu0
      %v564 = vadd.f32 %v448, %v563
      %v565 = vpop.f32.mrb[0].mxu0
      %v566 = vadd.f32 %v452, %v565
      %v567 = vpop.f32.mrb[0].mxu0
      %v568 = vadd.f32 %v448, %v567
      %v569 = vpop.f32.mrb[0].mxu0
      %v570 = vadd.f32 %v452, %v569
      %571 = vmatprep.mubr.bf16.mxu0 0
      %572 = vmatmul.mubr.bf16.gmra.mrb[0].mxu0 %v478
      %v573 = vpop.f32.mrb[0].mxu0
      %v574 = vadd.f32 %v448, %v573
      %v575 = vpop.f32.mrb[0].mxu0
      %v576 = vadd.f32 %v452, %v575
      %v577 = vpop.f32.mrb[0].mxu0
      %v578 = vadd.f32 %v448, %v577
      %v579 = vpop.f32.mrb[0].mxu0
      %v580 = vadd.f32 %v452, %v579
      %581 = vmatprep.mubr.bf16.mxu0 0
      %582 = vmatmul.mubr.bf16.gmra.mrb[0].mxu0 %v481
      %v583 = vpop.f32.mrb[0].mxu0
      %v584 = vadd.f32 %v448, %v583
      %v585 = vpop.f32.mrb[0].mxu0
      %v586 = vadd.f32 %v452, %v585
      %v587 = vpop.f32.mrb[0].mxu0
      %v588 = vadd.f32 %v448, %v587
      %v589 = vpop.f32.mrb[0].mxu0
      %v590 = vadd.f32 %v452, %v589
      %591 = vmatprep.mubr.bf16.mxu0 0
      %592 = vmatmul.mubr.bf16.gmra.mrb[0].mxu0 %v484
      %v593 = vpop.f32.mrb[0].mxu0
      %v594 = vadd.f32 %v448, %v593
      %v595 = vpop.f32.mrb[0].mxu0
      %v596 = vadd.f32 %v452, %v595
      %v597 = vpop.f32.mrb[0].mxu0
      %v598 = vadd.f32 %v448, %v597
      %v599 = vpop.f32.mrb[0].mxu0
      %v600 = vadd.f32 %v452, %v599
      %601 = vmatprep.mubr.bf16.mxu0 0
      %602 = vmatmul.mubr.bf16.gmra.mrb[0].mxu0 %v487
      %v603 = vpop.f32.mrb[0].mxu0
      %v604 = vadd.f32 %v448, %v603
      %v605 = vpop.f32.mrb[0].mxu0
      %v606 = vadd.f32 %v452, %v605
      %v607 = vpop.f32.mrb[0].mxu0
      %v608 = vadd.f32 %v448, %v607
      %v609 = vpop.f32.mrb[0].mxu0
      %v610 = vadd.f32 %v452, %v609
      %611 = vmatprep.mubr.bf16.mxu0 0
      %612 = vmatmul.mubr.bf16.gmra.mrb[0].mxu0 %v490
      %v613 = vpop.f32.mrb[0].mxu0
      %v614 = vadd.f32 %v448, %v613
      %v615 = vpop.f32.mrb[0].mxu0
      %v616 = vadd.f32 %v452, %v615
      %v617 = vpop.f32.mrb[0].mxu0
      %v618 = vadd.f32 %v448, %v617
      %v619 = vpop.f32.mrb[0].mxu0
      %v620 = vadd.f32 %v452, %v619
      %621 = vmatprep.mubr.bf16.mxu0 0
      %622 = vmatmul.mubr.bf16.gmra.mrb[0].mxu0 %v493
      %v623 = vpop.f32.mrb[0].mxu0
      %v624 = vadd.f32 %v448, %v623
      %v625 = vpop.f32.mrb[0].mxu0
      %v626 = vadd.f32 %v452, %v625
      %v627 = vpop.f32.mrb[0].mxu0
      %v628 = vadd.f32 %v448, %v627
      %v629 = vpop.f32.mrb[0].mxu0
      %v630 = vadd.f32 %v452, %v629
      %631 = vmatprep.mubr.bf16.mxu0 0
      %632 = vmatmul.mubr.bf16.gmra.mrb[0].mxu0 %v496
      %v633 = vpop.f32.mrb[0].mxu0
      %v634 = vadd.f32 %v448, %v633
      %v635 = vpop.f32.mrb[0].mxu0
      %v636 = vadd.f32 %v452, %v635
      %v637 = vpop.f32.mrb[0].mxu0
      %v638 = vadd.f32 %v448, %v637
      %v639 = vpop.f32.mrb[0].mxu0
      %v640 = vadd.f32 %v452, %v639
      %641 = vmatprep.mubr.bf16.mxu0 0
      %642 = vmatmul.mubr.bf16.gmra.mrb[0].mxu0 %v499
      %v643 = vpop.f32.mrb[0].mxu0
      %v644 = vadd.f32 %v448, %v643
      %v645 = vpop.f32.mrb[0].mxu0
      %v646 = vadd.f32 %v452, %v645
      %v647 = vpop.f32.mrb[0].mxu0
      %v648 = vadd.f32 %v448, %v647
      %v649 = vpop.f32.mrb[0].mxu0
      %v650 = vadd.f32 %v452, %v649
      %651 = vmatprep.mubr.bf16.mxu0 0
      %652 = vmatmul.mubr.bf16.gmra.mrb[0].mxu0 %v502
      %v653 = vpop.f32.mrb[0].mxu0
      %v654 = vadd.f32 %v448, %v653
      %v655 = vpop.f32.mrb[0].mxu0
      %v656 = vadd.f32 %v452, %v655
      %v657 = vpop.f32.mrb[0].mxu0
      %v658 = vadd.f32 %v448, %v657
      %v659 = vpop.f32.mrb[0].mxu0
      %v660 = vadd.f32 %v452, %v659
      %661 = vmatprep.mubr.bf16.mxu0 0
      %662 = vmatmul.mubr.bf16.gmra.mrb[0].mxu0 %v505
      %v663 = vpop.f32.mrb[0].mxu0
      %v664 = vadd.f32 %v448, %v663
      %v665 = vpop.f32.mrb[0].mxu0
      %v666 = vadd.f32 %v452, %v665
      %v667 = vpop.f32.mrb[0].mxu0
      %v668 = vadd.f32 %v448, %v667
      %v669 = vpop.f32.mrb[0].mxu0
      %v670 = vadd.f32 %v452, %v669
      %671 = vmatprep.mubr.bf16.mxu0 0
      %672 = vmatmul.mubr.bf16.gmra.mrb[0].mxu0 %v508
      %v673 = vpop.f32.mrb[0].mxu0
      %v674 = vadd.f32 %v448, %v673
      %v675 = vpop.f32.mrb[0].mxu0
      %v676 = vadd.f32 %v452, %v675
      %v677 = vpop.f32.mrb[0].mxu0
      %v678 = vadd.f32 %v448, %v677
      %v679 = vpop.f32.mrb[0].mxu0
      %v680 = vadd.f32 %v452, %v679
      %681 = vmatprep.mubr.bf16.mxu0 0
      %682 = vmatmul.mubr.bf16.gmra.mrb[0].mxu0 %v511
      %v683 = vpop.f32.mrb[0].mxu0
      %v684 = vadd.f32 %v448, %v683
      %v685 = vpop.f32.mrb[0].mxu0
      %v686 = vadd.f32 %v452, %v685
      %v687 = vpop.f32.mrb[0].mxu0
      %v688 = vadd.f32 %v448, %v687
      %v689 = vpop.f32.mrb[0].mxu0
      %v690 = vadd.f32 %v452, %v689
      %691 = vmatprep.mubr.bf16.mxu0 0
      %692 = vmatmul.mubr.bf16.gmra.mrb[0].mxu0 %v514
      %v693 = vpop.f32.mrb[0].mxu0
      %v694 = vadd.f32 %v448, %v693
      %v695 = vpop.f32.mrb[0].mxu0
      %v696 = vadd.f32 %v452, %v695
      %v697 = vpop.f32.mrb[0].mxu0
      %v698 = vadd.f32 %v448, %v697
      %v699 = vpop.f32.mrb[0].mxu0
      %v700 = vadd.f32 %v452, %v699
      %701 = vmatprep.mubr.bf16.mxu0 0
      %702 = vmatmul.mubr.bf16.gmra.mrb[0].mxu0 %v517
      %v703 = vpop.f32.mrb[0].mxu0
      %v704 = vadd.f32 %v448, %v703
      %v705 = vpop.f32.mrb[0].mxu0
      %v706 = vadd.f32 %v452, %v705
      %v707 = vpop.f32.mrb[0].mxu0
      %v708 = vadd.f32 %v448, %v707
      %v709 = vpop.f32.mrb[0].mxu0
      %v710 = vadd.f32 %v452, %v709
      %711 = vmatprep.mubr.bf16.mxu0 0
      %712 = vmatmul.mubr.bf16.gmra.mrb[0].mxu0 %v520
      %v713 = vpop.f32.mrb[0].mxu0
      %v714 = vadd.f32 %v448, %v713
      %v715 = vpop.f32.mrb[0].mxu0
      %v716 = vadd.f32 %v452, %v715
      %v717 = vpop.f32.mrb[0].mxu0
      %v718 = vadd.f32 %v448, %v717
      %v719 = vpop.f32.mrb[0].mxu0
      %v720 = vadd.f32 %v452, %v719
      %721 = vdwg.mxu0
      %v722 = vmax.f32 %v564, 0.0
      %v723 = vmax.f32 %v566, 0.0
      %v724 = vmax.f32 %v568, 0.0
      %v725 = vmax.f32 %v570, 0.0
      %v726 = vmax.f32 %v574, 0.0
      %v727 = vmax.f32 %v576, 0.0
      %v728 = vmax.f32 %v578, 0.0
      %v729 = vmax.f32 %v580, 0.0
      %v730 = vmax.f32 %v584, 0.0
      %v731 = vmax.f32 %v586, 0.0
      %v732 = vmax.f32 %v588, 0.0
      %v733 = vmax.f32 %v590, 0.0
      %v734 = vmax.f32 %v594, 0.0
      %v735 = vmax.f32 %v596, 0.0
      %v736 = vmax.f32 %v598, 0.0
      %v737 = vmax.f32 %v600, 0.0
      %v738 = vmax.f32 %v604, 0.0
      %v739 = vmax.f32 %v606, 0.0
      %v740 = vmax.f32 %v608, 0.0
      %v741 = vmax.f32 %v610, 0.0
      %v742 = vmax.f32 %v614, 0.0
      %v743 = vmax.f32 %v616, 0.0
      %v744 = vmax.f32 %v618, 0.0
      %v745 = vmax.f32 %v620, 0.0
      %v746 = vmax.f32 %v624, 0.0
      %v747 = vmax.f32 %v626, 0.0
      %v748 = vmax.f32 %v628, 0.0
      %v749 = vmax.f32 %v630, 0.0
      %v750 = vmax.f32 %v634, 0.0
      %v751 = vmax.f32 %v636, 0.0
      %v752 = vmax.f32 %v638, 0.0
      %v753 = vmax.f32 %v640, 0.0
      %v754 = vmax.f32 %v644, 0.0
      %v755 = vmax.f32 %v646, 0.0
      %v756 = vmax.f32 %v648, 0.0
      %v757 = vmax.f32 %v650, 0.0
      %v758 = vmax.f32 %v654, 0.0
      %v759 = vmax.f32 %v656, 0.0
      %v760 = vmax.f32 %v658, 0.0
      %v761 = vmax.f32 %v660, 0.0
      %v762 = vmax.f32 %v664, 0.0
      %v763 = vmax.f32 %v666, 0.0
      %v764 = vmax.f32 %v668, 0.0
      %v765 = vmax.f32 %v670, 0.0
      %v766 = vmax.f32 %v674, 0.0
      %v767 = vmax.f32 %v676, 0.0
      %v768 = vmax.f32 %v678, 0.0
      %v769 = vmax.f32 %v680, 0.0
      %v770 = vmax.f32 %v684, 0.0
      %v771 = vmax.f32 %v686, 0.0
      %v772 = vmax.f32 %v688, 0.0
      %v773 = vmax.f32 %v690, 0.0
      %v774 = vmax.f32 %v694, 0.0
      %v775 = vmax.f32 %v696, 0.0
      %v776 = vmax.f32 %v698, 0.0
      %v777 = vmax.f32 %v700, 0.0
      %v778 = vmax.f32 %v704, 0.0
      %v779 = vmax.f32 %v706, 0.0
      %v780 = vmax.f32 %v708, 0.0
      %v781 = vmax.f32 %v710, 0.0
      %v782 = vmax.f32 %v714, 0.0
      %v783 = vmax.f32 %v716, 0.0
      %v784 = vmax.f32 %v718, 0.0
      %v785 = vmax.f32 %v720, 0.0
      %v786 = vpack.c.bf16 %v724, %v722
      %v787 = vpack.c.bf16 %v725, %v723
      %v788 = vpack.c.bf16 %v728, %v726
      %v789 = vpack.c.bf16 %v729, %v727
      %v790 = vpack.c.bf16 %v732, %v730
      %v791 = vpack.c.bf16 %v733, %v731
      %v792 = vpack.c.bf16 %v736, %v734
      %v793 = vpack.c.bf16 %v737, %v735
      %v794 = vpack.c.bf16 %v740, %v738
      %v795 = vpack.c.bf16 %v741, %v739
      %v796 = vpack.c.bf16 %v744, %v742
      %v797 = vpack.c.bf16 %v745, %v743
      %v798 = vpack.c.bf16 %v748, %v746
      %v799 = vpack.c.bf16 %v749, %v747
      %v800 = vpack.c.bf16 %v752, %v750
      %v801 = vpack.c.bf16 %v753, %v751
      %v802 = vpack.c.bf16 %v756, %v754
      %v803 = vpack.c.bf16 %v757, %v755
      %v804 = vpack.c.bf16 %v760, %v758
      %v805 = vpack.c.bf16 %v761, %v759
      %v806 = vpack.c.bf16 %v764, %v762
      %v807 = vpack.c.bf16 %v765, %v763
      %v808 = vpack.c.bf16 %v768, %v766
      %v809 = vpack.c.bf16 %v769, %v767
      %v810 = vpack.c.bf16 %v772, %v770
      %v811 = vpack.c.bf16 %v773, %v771
      %v812 = vpack.c.bf16 %v776, %v774
      %v813 = vpack.c.bf16 %v777, %v775
      %v814 = vpack.c.bf16 %v780, %v778
      %v815 = vpack.c.bf16 %v781, %v779
      %v816 = vpack.c.bf16 %v784, %v782
      %v817 = vpack.c.bf16 %v785, %v783
      %v818 = vld [vmem:[%s3] sm:$0xff]
      %v819 = vld [vmem:[%s3 + $0x8] sm:$0xff]
      %v820 = vld [vmem:[%s3 + $0x10] sm:$0xff]
      %v821 = vld [vmem:[%s3 + $0x18] sm:$0xff]
      %v822 = vld [vmem:[%s3 + $0x20] sm:$0xff]
      %v823 = vld [vmem:[%s3 + $0x28] sm:$0xff]
      %v824 = vld [vmem:[%s3 + $0x30] sm:$0xff]
      %v825 = vld [vmem:[%s3 + $0x38] sm:$0xff]
      %v826 = vld [vmem:[%s3 + $0x40] sm:$0xff]
      %v827 = vld [vmem:[%s3 + $0x48] sm:$0xff]
      %v828 = vld [vmem:[%s3 + $0x50] sm:$0xff]
      %v829 = vld [vmem:[%s3 + $0x58] sm:$0xff]
      %v830 = vld [vmem:[%s3 + $0x60] sm:$0xff]
      %v831 = vld [vmem:[%s3 + $0x68] sm:$0xff]
      %v832 = vld [vmem:[%s3 + $0x70] sm:$0xff]
      %v833 = vld [vmem:[%s3 + $0x78] sm:$0xff]
      %v834 = vld [vmem:[%s3 + $0x80] sm:$0xff]
      %v835 = vld [vmem:[%s3 + $0x88] sm:$0xff]
      %v836 = vld [vmem:[%s3 + $0x90] sm:$0xff]
      %v837 = vld [vmem:[%s3 + $0x98] sm:$0xff]
      %v838 = vld [vmem:[%s3 + $0xa0] sm:$0xff]
      %v839 = vld [vmem:[%s3 + $0xa8] sm:$0xff]
      %v840 = vld [vmem:[%s3 + $0xb0] sm:$0xff]
      %v841 = vld [vmem:[%s3 + $0xb8] sm:$0xff]
      %v842 = vld [vmem:[%s3 + $0xc0] sm:$0xff]
      %v843 = vld [vmem:[%s3 + $0xc8] sm:$0xff]
      %v844 = vld [vmem:[%s3 + $0xd0] sm:$0xff]
      %v845 = vld [vmem:[%s3 + $0xd8] sm:$0xff]
      %v846 = vld [vmem:[%s3 + $0xe0] sm:$0xff]
      %v847 = vld [vmem:[%s3 + $0xe8] sm:$0xff]
      %v848 = vld [vmem:[%s3 + $0xf0] sm:$0xff]
      %v849 = vld [vmem:[%s3 + $0xf8] sm:$0xff]
      %v850 = vld [vmem:[%s4] sm:$0x3]
      %v852 = vlaneseq
      %v853 = vshrl.u32 %v852, 7
      %v854 = vsub.s32 0, %v853
      %v855 = vrot.slane %v850, %v854
      %v856 = vlaneseq
      %v857 = vshrl.u32 %v856, 7
      %v858 = vsub.s32 1, %v857
      %v859 = vrot.slane %v850, %v858
      %v894 = vunpack.c.l.b16 %v818
      %v895 = vunpack.c.h.b16 %v818
      %v896 = vunpack.c.l.b16 %v819
      %v897 = vunpack.c.h.b16 %v819
      %v898 = vunpack.c.l.b16 %v820
      %v899 = vunpack.c.h.b16 %v820
      %v900 = vunpack.c.l.b16 %v821
      %v901 = vunpack.c.h.b16 %v821
      %v902 = vunpack.c.l.b16 %v822
      %v903 = vunpack.c.h.b16 %v822
      %v904 = vunpack.c.l.b16 %v823
      %v905 = vunpack.c.h.b16 %v823
      %v906 = vunpack.c.l.b16 %v824
      %v907 = vunpack.c.h.b16 %v824
      %v908 = vunpack.c.l.b16 %v825
      %v909 = vunpack.c.h.b16 %v825
      %v910 = vunpack.c.l.b16 %v826
      %v911 = vunpack.c.h.b16 %v826
      %v912 = vunpack.c.l.b16 %v827
      %v913 = vunpack.c.h.b16 %v827
      %v914 = vunpack.c.l.b16 %v828
      %v915 = vunpack.c.h.b16 %v828
      %v916 = vunpack.c.l.b16 %v829
      %v917 = vunpack.c.h.b16 %v829
      %v918 = vunpack.c.l.b16 %v830
      %v919 = vunpack.c.h.b16 %v830
      %v920 = vunpack.c.l.b16 %v831
      %v921 = vunpack.c.h.b16 %v831
      %v922 = vunpack.c.l.b16 %v832
      %v923 = vunpack.c.h.b16 %v832
      %v924 = vunpack.c.l.b16 %v833
      %v925 = vunpack.c.h.b16 %v833
      %v926 = vunpack.c.l.b16 %v834
      %v927 = vunpack.c.h.b16 %v834
      %v928 = vunpack.c.l.b16 %v835
      %v929 = vunpack.c.h.b16 %v835
      %v930 = vunpack.c.l.b16 %v836
      %v931 = vunpack.c.h.b16 %v836
      %v932 = vunpack.c.l.b16 %v837
      %v933 = vunpack.c.h.b16 %v837
      %v934 = vunpack.c.l.b16 %v838
      %v935 = vunpack.c.h.b16 %v838
      %v936 = vunpack.c.l.b16 %v839
      %v937 = vunpack.c.h.b16 %v839
      %v938 = vunpack.c.l.b16 %v840
      %v939 = vunpack.c.h.b16 %v840
      %v940 = vunpack.c.l.b16 %v841
      %v941 = vunpack.c.h.b16 %v841
      %v942 = vunpack.c.l.b16 %v842
      %v943 = vunpack.c.h.b16 %v842
      %v944 = vunpack.c.l.b16 %v843
      %v945 = vunpack.c.h.b16 %v843
      %v946 = vunpack.c.l.b16 %v844
      %v947 = vunpack.c.h.b16 %v844
      %v948 = vunpack.c.l.b16 %v845
      %v949 = vunpack.c.h.b16 %v845
      %v950 = vunpack.c.l.b16 %v846
      %v951 = vunpack.c.h.b16 %v846
      %v952 = vunpack.c.l.b16 %v847
      %v953 = vunpack.c.h.b16 %v847
      %v954 = vunpack.c.l.b16 %v848
      %v955 = vunpack.c.h.b16 %v848
      %v956 = vunpack.c.l.b16 %v849
      %v957 = vunpack.c.h.b16 %v849
      %v958 = vpack.c.b16 %v896, %v894
      %v959 = vpack.c.b16 %v897, %v895
      %v960 = vpack.c.b16 %v900, %v898
      %v961 = vpack.c.b16 %v901, %v899
      %v962 = vpack.c.b16 %v904, %v902
      %v963 = vpack.c.b16 %v905, %v903
      %v964 = vpack.c.b16 %v908, %v906
      %v965 = vpack.c.b16 %v909, %v907
      %v966 = vpack.c.b16 %v912, %v910
      %v967 = vpack.c.b16 %v913, %v911
      %v968 = vpack.c.b16 %v916, %v914
      %v969 = vpack.c.b16 %v917, %v915
      %v970 = vpack.c.b16 %v920, %v918
      %v971 = vpack.c.b16 %v921, %v919
      %v972 = vpack.c.b16 %v924, %v922
      %v973 = vpack.c.b16 %v925, %v923
      %v974 = vpack.c.b16 %v928, %v926
      %v975 = vpack.c.b16 %v929, %v927
      %v976 = vpack.c.b16 %v932, %v930
      %v977 = vpack.c.b16 %v933, %v931
      %v978 = vpack.c.b16 %v936, %v934
      %v979 = vpack.c.b16 %v937, %v935
      %v980 = vpack.c.b16 %v940, %v938
      %v981 = vpack.c.b16 %v941, %v939
      %v982 = vpack.c.b16 %v944, %v942
      %v983 = vpack.c.b16 %v945, %v943
      %v984 = vpack.c.b16 %v948, %v946
      %v985 = vpack.c.b16 %v949, %v947
      %v986 = vpack.c.b16 %v952, %v950
      %v987 = vpack.c.b16 %v953, %v951
      %v988 = vpack.c.b16 %v956, %v954
      %v989 = vpack.c.b16 %v957, %v955
      %1022 = vmatprep.subr.bf16.mxu0 %v959
      %1023 = vmatpush1.bf16.msra.mxu0 %v958
      %1024 = vmatprep.subr.bf16.mxu0 %v961
      %1025 = vmatpush1.bf16.msra.mxu0 %v960
      %1026 = vmatprep.subr.bf16.mxu0 %v963
      %1027 = vmatpush1.bf16.msra.mxu0 %v962
      %1028 = vmatprep.subr.bf16.mxu0 %v965
      %1029 = vmatpush1.bf16.msra.mxu0 %v964
      %1030 = vmatprep.subr.bf16.mxu0 %v967
      %1031 = vmatpush1.bf16.msra.mxu0 %v966
      %1032 = vmatprep.subr.bf16.mxu0 %v969
      %1033 = vmatpush1.bf16.msra.mxu0 %v968
      %1034 = vmatprep.subr.bf16.mxu0 %v971
      %1035 = vmatpush1.bf16.msra.mxu0 %v970
      %1036 = vmatprep.subr.bf16.mxu0 %v973
      %1037 = vmatpush1.bf16.msra.mxu0 %v972
      %1038 = vmatprep.subr.bf16.mxu0 %v975
      %1039 = vmatpush1.bf16.msra.mxu0 %v974
      %1040 = vmatprep.subr.bf16.mxu0 %v977
      %1041 = vmatpush1.bf16.msra.mxu0 %v976
      %1042 = vmatprep.subr.bf16.mxu0 %v979
      %1043 = vmatpush1.bf16.msra.mxu0 %v978
      %1044 = vmatprep.subr.bf16.mxu0 %v981
      %1045 = vmatpush1.bf16.msra.mxu0 %v980
      %1046 = vmatprep.subr.bf16.mxu0 %v983
      %1047 = vmatpush1.bf16.msra.mxu0 %v982
      %1048 = vmatprep.subr.bf16.mxu0 %v985
      %1049 = vmatpush1.bf16.msra.mxu0 %v984
      %1050 = vmatprep.subr.bf16.mxu0 %v987
      %1051 = vmatpush1.bf16.msra.mxu0 %v986
      %1052 = vmatprep.subr.bf16.mxu0 %v989
      %1053 = vmatpush1.bf16.msra.mxu0 %v988
      %1054 = vmatprep.mubr.bf16.mxu0 %v787
      %1055 = vmatmul.mubr.bf16.gmra.mrb[0].mxu0 %v786
      %v1056 = vpop.f32.mrb[0].mxu0
      %v1057 = vadd.f32 %v855, %v1056
      %v1058 = vpop.f32.mrb[0].mxu0
      %v1059 = vadd.f32 %v859, %v1058
      %v1060 = vpop.f32.mrb[0].mxu0
      %v1061 = vadd.f32 %v855, %v1060
      %v1062 = vpop.f32.mrb[0].mxu0
      %v1063 = vadd.f32 %v859, %v1062
      %1064 = vmatprep.mubr.bf16.mxu0 %v789
      %1065 = vmatmul.mubr.bf16.gmra.mrb[0].mxu0 %v788
      %v1066 = vpop.f32.mrb[0].mxu0
      %v1067 = vadd.f32 %v855, %v1066
      %v1068 = vpop.f32.mrb[0].mxu0
      %v1069 = vadd.f32 %v859, %v1068
      %v1070 = vpop.f32.mrb[0].mxu0
      %v1071 = vadd.f32 %v855, %v1070
      %v1072 = vpop.f32.mrb[0].mxu0
      %v1073 = vadd.f32 %v859, %v1072
      %1074 = vmatprep.mubr.bf16.mxu0 %v791
      %1075 = vmatmul.mubr.bf16.gmra.mrb[0].mxu0 %v790
      %v1076 = vpop.f32.mrb[0].mxu0
      %v1077 = vadd.f32 %v855, %v1076
      %v1078 = vpop.f32.mrb[0].mxu0
      %v1079 = vadd.f32 %v859, %v1078
      %v1080 = vpop.f32.mrb[0].mxu0
      %v1081 = vadd.f32 %v855, %v1080
      %v1082 = vpop.f32.mrb[0].mxu0
      %v1083 = vadd.f32 %v859, %v1082
      %1084 = vmatprep.mubr.bf16.mxu0 %v793
      %1085 = vmatmul.mubr.bf16.gmra.mrb[0].mxu0 %v792
      %v1086 = vpop.f32.mrb[0].mxu0
      %v1087 = vadd.f32 %v855, %v1086
      %v1088 = vpop.f32.mrb[0].mxu0
      %v1089 = vadd.f32 %v859, %v1088
      %v1090 = vpop.f32.mrb[0].mxu0
      %v1091 = vadd.f32 %v855, %v1090
      %v1092 = vpop.f32.mrb[0].mxu0
      %v1093 = vadd.f32 %v859, %v1092
      %1094 = vmatprep.mubr.bf16.mxu0 %v795
      %1095 = vmatmul.mubr.bf16.gmra.mrb[0].mxu0 %v794
      %v1096 = vpop.f32.mrb[0].mxu0
      %v1097 = vadd.f32 %v855, %v1096
      %v1098 = vpop.f32.mrb[0].mxu0
      %v1099 = vadd.f32 %v859, %v1098
      %v1100 = vpop.f32.mrb[0].mxu0
      %v1101 = vadd.f32 %v855, %v1100
      %v1102 = vpop.f32.mrb[0].mxu0
      %v1103 = vadd.f32 %v859, %v1102
      %1104 = vmatprep.mubr.bf16.mxu0 %v797
      %1105 = vmatmul.mubr.bf16.gmra.mrb[0].mxu0 %v796
      %v1106 = vpop.f32.mrb[0].mxu0
      %v1107 = vadd.f32 %v855, %v1106
      %v1108 = vpop.f32.mrb[0].mxu0
      %v1109 = vadd.f32 %v859, %v1108
      %v1110 = vpop.f32.mrb[0].mxu0
      %v1111 = vadd.f32 %v855, %v1110
      %v1112 = vpop.f32.mrb[0].mxu0
      %v1113 = vadd.f32 %v859, %v1112
      %1114 = vmatprep.mubr.bf16.mxu0 %v799
      %1115 = vmatmul.mubr.bf16.gmra.mrb[0].mxu0 %v798
      %v1116 = vpop.f32.mrb[0].mxu0
      %v1117 = vadd.f32 %v855, %v1116
      %v1118 = vpop.f32.mrb[0].mxu0
      %v1119 = vadd.f32 %v859, %v1118
      %v1120 = vpop.f32.mrb[0].mxu0
      %v1121 = vadd.f32 %v855, %v1120
      %v1122 = vpop.f32.mrb[0].mxu0
      %v1123 = vadd.f32 %v859, %v1122
      %1124 = vmatprep.mubr.bf16.mxu0 %v801
      %1125 = vmatmul.mubr.bf16.gmra.mrb[0].mxu0 %v800
      %v1126 = vpop.f32.mrb[0].mxu0
      %v1127 = vadd.f32 %v855, %v1126
      %v1128 = vpop.f32.mrb[0].mxu0
      %v1129 = vadd.f32 %v859, %v1128
      %v1130 = vpop.f32.mrb[0].mxu0
      %v1131 = vadd.f32 %v855, %v1130
      %v1132 = vpop.f32.mrb[0].mxu0
      %v1133 = vadd.f32 %v859, %v1132
      %1134 = vmatprep.mubr.bf16.mxu0 %v803
      %1135 = vmatmul.mubr.bf16.gmra.mrb[0].mxu0 %v802
      %v1136 = vpop.f32.mrb[0].mxu0
      %v1137 = vadd.f32 %v855, %v1136
      %v1138 = vpop.f32.mrb[0].mxu0
      %v1139 = vadd.f32 %v859, %v1138
      %v1140 = vpop.f32.mrb[0].mxu0
      %v1141 = vadd.f32 %v855, %v1140
      %v1142 = vpop.f32.mrb[0].mxu0
      %v1143 = vadd.f32 %v859, %v1142
      %1144 = vmatprep.mubr.bf16.mxu0 %v805
      %1145 = vmatmul.mubr.bf16.gmra.mrb[0].mxu0 %v804
      %v1146 = vpop.f32.mrb[0].mxu0
      %v1147 = vadd.f32 %v855, %v1146
      %v1148 = vpop.f32.mrb[0].mxu0
      %v1149 = vadd.f32 %v859, %v1148
      %v1150 = vpop.f32.mrb[0].mxu0
      %v1151 = vadd.f32 %v855, %v1150
      %v1152 = vpop.f32.mrb[0].mxu0
      %v1153 = vadd.f32 %v859, %v1152
      %1154 = vmatprep.mubr.bf16.mxu0 %v807
      %1155 = vmatmul.mubr.bf16.gmra.mrb[0].mxu0 %v806
      %v1156 = vpop.f32.mrb[0].mxu0
      %v1157 = vadd.f32 %v855, %v1156
      %v1158 = vpop.f32.mrb[0].mxu0
      %v1159 = vadd.f32 %v859, %v1158
      %v1160 = vpop.f32.mrb[0].mxu0
      %v1161 = vadd.f32 %v855, %v1160
      %v1162 = vpop.f32.mrb[0].mxu0
      %v1163 = vadd.f32 %v859, %v1162
      %1164 = vmatprep.mubr.bf16.mxu0 %v809
      %1165 = vmatmul.mubr.bf16.gmra.mrb[0].mxu0 %v808
      %v1166 = vpop.f32.mrb[0].mxu0
      %v1167 = vadd.f32 %v855, %v1166
      %v1168 = vpop.f32.mrb[0].mxu0
      %v1169 = vadd.f32 %v859, %v1168
      %v1170 = vpop.f32.mrb[0].mxu0
      %v1171 = vadd.f32 %v855, %v1170
      %v1172 = vpop.f32.mrb[0].mxu0
      %v1173 = vadd.f32 %v859, %v1172
      %1174 = vmatprep.mubr.bf16.mxu0 %v811
      %1175 = vmatmul.mubr.bf16.gmra.mrb[0].mxu0 %v810
      %v1176 = vpop.f32.mrb[0].mxu0
      %v1177 = vadd.f32 %v855, %v1176
      %v1178 = vpop.f32.mrb[0].mxu0
      %v1179 = vadd.f32 %v859, %v1178
      %v1180 = vpop.f32.mrb[0].mxu0
      %v1181 = vadd.f32 %v855, %v1180
      %v1182 = vpop.f32.mrb[0].mxu0
      %v1183 = vadd.f32 %v859, %v1182
      %1184 = vmatprep.mubr.bf16.mxu0 %v813
      %1185 = vmatmul.mubr.bf16.gmra.mrb[0].mxu0 %v812
      %v1186 = vpop.f32.mrb[0].mxu0
      %v1187 = vadd.f32 %v855, %v1186
      %v1188 = vpop.f32.mrb[0].mxu0
      %v1189 = vadd.f32 %v859, %v1188
      %v1190 = vpop.f32.mrb[0].mxu0
      %v1191 = vadd.f32 %v855, %v1190
      %v1192 = vpop.f32.mrb[0].mxu0
      %v1193 = vadd.f32 %v859, %v1192
      %1194 = vmatprep.mubr.bf16.mxu0 %v815
      %1195 = vmatmul.mubr.bf16.gmra.mrb[0].mxu0 %v814
      %v1196 = vpop.f32.mrb[0].mxu0
      %v1197 = vadd.f32 %v855, %v1196
      %v1198 = vpop.f32.mrb[0].mxu0
      %v1199 = vadd.f32 %v859, %v1198
      %v1200 = vpop.f32.mrb[0].mxu0
      %v1201 = vadd.f32 %v855, %v1200
      %v1202 = vpop.f32.mrb[0].mxu0
      %v1203 = vadd.f32 %v859, %v1202
      %1204 = vmatprep.mubr.bf16.mxu0 %v817
      %1205 = vmatmul.mubr.bf16.gmra.mrb[0].mxu0 %v816
      %v1206 = vpop.f32.mrb[0].mxu0
      %v1207 = vadd.f32 %v855, %v1206
      %v1208 = vpop.f32.mrb[0].mxu0
      %v1209 = vadd.f32 %v859, %v1208
      %v1210 = vpop.f32.mrb[0].mxu0
      %v1211 = vadd.f32 %v855, %v1210
      %v1212 = vpop.f32.mrb[0].mxu0
      %v1213 = vadd.f32 %v859, %v1212
      %1214 = vdwg.mxu0
      %v1215 = vmax.f32 %v1057, 0.0
      %v1216 = vmax.f32 %v1059, 0.0
      %v1217 = vmax.f32 %v1061, 0.0
      %v1218 = vmax.f32 %v1063, 0.0
      %v1219 = vmax.f32 %v1067, 0.0
      %v1220 = vmax.f32 %v1069, 0.0
      %v1221 = vmax.f32 %v1071, 0.0
      %v1222 = vmax.f32 %v1073, 0.0
      %v1223 = vmax.f32 %v1077, 0.0
      %v1224 = vmax.f32 %v1079, 0.0
      %v1225 = vmax.f32 %v1081, 0.0
      %v1226 = vmax.f32 %v1083, 0.0
      %v1227 = vmax.f32 %v1087, 0.0
      %v1228 = vmax.f32 %v1089, 0.0
      %v1229 = vmax.f32 %v1091, 0.0
      %v1230 = vmax.f32 %v1093, 0.0
      %v1231 = vmax.f32 %v1097, 0.0
      %v1232 = vmax.f32 %v1099, 0.0
      %v1233 = vmax.f32 %v1101, 0.0
      %v1234 = vmax.f32 %v1103, 0.0
      %v1235 = vmax.f32 %v1107, 0.0
      %v1236 = vmax.f32 %v1109, 0.0
      %v1237 = vmax.f32 %v1111, 0.0
      %v1238 = vmax.f32 %v1113, 0.0
      %v1239 = vmax.f32 %v1117, 0.0
      %v1240 = vmax.f32 %v1119, 0.0
      %v1241 = vmax.f32 %v1121, 0.0
      %v1242 = vmax.f32 %v1123, 0.0
      %v1243 = vmax.f32 %v1127, 0.0
      %v1244 = vmax.f32 %v1129, 0.0
      %v1245 = vmax.f32 %v1131, 0.0
      %v1246 = vmax.f32 %v1133, 0.0
      %v1247 = vmax.f32 %v1137, 0.0
      %v1248 = vmax.f32 %v1139, 0.0
      %v1249 = vmax.f32 %v1141, 0.0
      %v1250 = vmax.f32 %v1143, 0.0
      %v1251 = vmax.f32 %v1147, 0.0
      %v1252 = vmax.f32 %v1149, 0.0
      %v1253 = vmax.f32 %v1151, 0.0
      %v1254 = vmax.f32 %v1153, 0.0
      %v1255 = vmax.f32 %v1157, 0.0
      %v1256 = vmax.f32 %v1159, 0.0
      %v1257 = vmax.f32 %v1161, 0.0
      %v1258 = vmax.f32 %v1163, 0.0
      %v1259 = vmax.f32 %v1167, 0.0
      %v1260 = vmax.f32 %v1169, 0.0
      %v1261 = vmax.f32 %v1171, 0.0
      %v1262 = vmax.f32 %v1173, 0.0
      %v1263 = vmax.f32 %v1177, 0.0
      %v1264 = vmax.f32 %v1179, 0.0
      %v1265 = vmax.f32 %v1181, 0.0
      %v1266 = vmax.f32 %v1183, 0.0
      %v1267 = vmax.f32 %v1187, 0.0
      %v1268 = vmax.f32 %v1189, 0.0
      %v1269 = vmax.f32 %v1191, 0.0
      %v1270 = vmax.f32 %v1193, 0.0
      %v1271 = vmax.f32 %v1197, 0.0
      %v1272 = vmax.f32 %v1199, 0.0
      %v1273 = vmax.f32 %v1201, 0.0
      %v1274 = vmax.f32 %v1203, 0.0
      %v1275 = vmax.f32 %v1207, 0.0
      %v1276 = vmax.f32 %v1209, 0.0
      %v1277 = vmax.f32 %v1211, 0.0
      %v1278 = vmax.f32 %v1213, 0.0
      %v1279 = vpack.c.bf16 %v1217, %v1215
      %v1280 = vpack.c.bf16 %v1218, %v1216
      %v1281 = vpack.c.bf16 %v1221, %v1219
      %v1282 = vpack.c.bf16 %v1222, %v1220
      %v1283 = vpack.c.bf16 %v1225, %v1223
      %v1284 = vpack.c.bf16 %v1226, %v1224
      %v1285 = vpack.c.bf16 %v1229, %v1227
      %v1286 = vpack.c.bf16 %v1230, %v1228
      %v1287 = vpack.c.bf16 %v1233, %v1231
      %v1288 = vpack.c.bf16 %v1234, %v1232
      %v1289 = vpack.c.bf16 %v1237, %v1235
      %v1290 = vpack.c.bf16 %v1238, %v1236
      %v1291 = vpack.c.bf16 %v1241, %v1239
      %v1292 = vpack.c.bf16 %v1242, %v1240
      %v1293 = vpack.c.bf16 %v1245, %v1243
      %v1294 = vpack.c.bf16 %v1246, %v1244
      %v1295 = vpack.c.bf16 %v1249, %v1247
      %v1296 = vpack.c.bf16 %v1250, %v1248
      %v1297 = vpack.c.bf16 %v1253, %v1251
      %v1298 = vpack.c.bf16 %v1254, %v1252
      %v1299 = vpack.c.bf16 %v1257, %v1255
      %v1300 = vpack.c.bf16 %v1258, %v1256
      %v1301 = vpack.c.bf16 %v1261, %v1259
      %v1302 = vpack.c.bf16 %v1262, %v1260
      %v1303 = vpack.c.bf16 %v1265, %v1263
      %v1304 = vpack.c.bf16 %v1266, %v1264
      %v1305 = vpack.c.bf16 %v1269, %v1267
      %v1306 = vpack.c.bf16 %v1270, %v1268
      %v1307 = vpack.c.bf16 %v1273, %v1271
      %v1308 = vpack.c.bf16 %v1274, %v1272
      %v1309 = vpack.c.bf16 %v1277, %v1275
      %v1310 = vpack.c.bf16 %v1278, %v1276
      %v1311 = vld [vmem:[%s5] sm:$0xff]
      %v1312 = vld [vmem:[%s5 + $0x8] sm:$0xff]
      %v1313 = vld [vmem:[%s5 + $0x10] sm:$0xff]
      %v1314 = vld [vmem:[%s5 + $0x18] sm:$0xff]
      %v1315 = vld [vmem:[%s5 + $0x20] sm:$0xff]
      %v1316 = vld [vmem:[%s5 + $0x28] sm:$0xff]
      %v1317 = vld [vmem:[%s5 + $0x30] sm:$0xff]
      %v1318 = vld [vmem:[%s5 + $0x38] sm:$0xff]
      %v1319 = vld [vmem:[%s5 + $0x40] sm:$0xff]
      %v1320 = vld [vmem:[%s5 + $0x48] sm:$0xff]
      %v1321 = vld [vmem:[%s5 + $0x50] sm:$0xff]
      %v1322 = vld [vmem:[%s5 + $0x58] sm:$0xff]
      %v1323 = vld [vmem:[%s5 + $0x60] sm:$0xff]
      %v1324 = vld [vmem:[%s5 + $0x68] sm:$0xff]
      %v1325 = vld [vmem:[%s5 + $0x70] sm:$0xff]
      %v1326 = vld [vmem:[%s5 + $0x78] sm:$0xff]
      %v1327 = vld [vmem:[%s5 + $0x80] sm:$0xff]
      %v1328 = vld [vmem:[%s5 + $0x88] sm:$0xff]
      %v1329 = vld [vmem:[%s5 + $0x90] sm:$0xff]
      %v1330 = vld [vmem:[%s5 + $0x98] sm:$0xff]
      %v1331 = vld [vmem:[%s5 + $0xa0] sm:$0xff]
      %v1332 = vld [vmem:[%s5 + $0xa8] sm:$0xff]
      %v1333 = vld [vmem:[%s5 + $0xb0] sm:$0xff]
      %v1334 = vld [vmem:[%s5 + $0xb8] sm:$0xff]
      %v1335 = vld [vmem:[%s5 + $0xc0] sm:$0xff]
      %v1336 = vld [vmem:[%s5 + $0xc8] sm:$0xff]
      %v1337 = vld [vmem:[%s5 + $0xd0] sm:$0xff]
      %v1338 = vld [vmem:[%s5 + $0xd8] sm:$0xff]
      %v1339 = vld [vmem:[%s5 + $0xe0] sm:$0xff]
      %v1340 = vld [vmem:[%s5 + $0xe8] sm:$0xff]
      %v1341 = vld [vmem:[%s5 + $0xf0] sm:$0xff]
      %v1342 = vld [vmem:[%s5 + $0xf8] sm:$0xff]
      %v1343 = vld [vmem:[%s6] sm:$0x3]
      %v1345 = vlaneseq
      %v1346 = vshrl.u32 %v1345, 7
      %v1347 = vsub.s32 0, %v1346
      %v1348 = vrot.slane %v1343, %v1347
      %v1349 = vlaneseq
      %v1350 = vshrl.u32 %v1349, 7
      %v1351 = vsub.s32 1, %v1350
      %v1352 = vrot.slane %v1343, %v1351
      %v1387 = vunpack.c.l.b16 %v1311
      %v1388 = vunpack.c.h.b16 %v1311
      %v1389 = vunpack.c.l.b16 %v1312
      %v1390 = vunpack.c.h.b16 %v1312
      %v1391 = vunpack.c.l.b16 %v1313
      %v1392 = vunpack.c.h.b16 %v1313
      %v1393 = vunpack.c.l.b16 %v1314
      %v1394 = vunpack.c.h.b16 %v1314
      %v1395 = vunpack.c.l.b16 %v1315
      %v1396 = vunpack.c.h.b16 %v1315
      %v1397 = vunpack.c.l.b16 %v1316
      %v1398 = vunpack.c.h.b16 %v1316
      %v1399 = vunpack.c.l.b16 %v1317
      %v1400 = vunpack.c.h.b16 %v1317
      %v1401 = vunpack.c.l.b16 %v1318
      %v1402 = vunpack.c.h.b16 %v1318
      %v1403 = vunpack.c.l.b16 %v1319
      %v1404 = vunpack.c.h.b16 %v1319
      %v1405 = vunpack.c.l.b16 %v1320
      %v1406 = vunpack.c.h.b16 %v1320
      %v1407 = vunpack.c.l.b16 %v1321
      %v1408 = vunpack.c.h.b16 %v1321
      %v1409 = vunpack.c.l.b16 %v1322
      %v1410 = vunpack.c.h.b16 %v1322
      %v1411 = vunpack.c.l.b16 %v1323
      %v1412 = vunpack.c.h.b16 %v1323
      %v1413 = vunpack.c.l.b16 %v1324
      %v1414 = vunpack.c.h.b16 %v1324
      %v1415 = vunpack.c.l.b16 %v1325
      %v1416 = vunpack.c.h.b16 %v1325
      %v1417 = vunpack.c.l.b16 %v1326
      %v1418 = vunpack.c.h.b16 %v1326
      %v1419 = vunpack.c.l.b16 %v1327
      %v1420 = vunpack.c.h.b16 %v1327
      %v1421 = vunpack.c.l.b16 %v1328
      %v1422 = vunpack.c.h.b16 %v1328
      %v1423 = vunpack.c.l.b16 %v1329
      %v1424 = vunpack.c.h.b16 %v1329
      %v1425 = vunpack.c.l.b16 %v1330
      %v1426 = vunpack.c.h.b16 %v1330
      %v1427 = vunpack.c.l.b16 %v1331
      %v1428 = vunpack.c.h.b16 %v1331
      %v1429 = vunpack.c.l.b16 %v1332
      %v1430 = vunpack.c.h.b16 %v1332
      %v1431 = vunpack.c.l.b16 %v1333
      %v1432 = vunpack.c.h.b16 %v1333
      %v1433 = vunpack.c.l.b16 %v1334
      %v1434 = vunpack.c.h.b16 %v1334
      %v1435 = vunpack.c.l.b16 %v1335
      %v1436 = vunpack.c.h.b16 %v1335
      %v1437 = vunpack.c.l.b16 %v1336
      %v1438 = vunpack.c.h.b16 %v1336
      %v1439 = vunpack.c.l.b16 %v1337
      %v1440 = vunpack.c.h.b16 %v1337
      %v1441 = vunpack.c.l.b16 %v1338
      %v1442 = vunpack.c.h.b16 %v1338
      %v1443 = vunpack.c.l.b16 %v1339
      %v1444 = vunpack.c.h.b16 %v1339
      %v1445 = vunpack.c.l.b16 %v1340
      %v1446 = vunpack.c.h.b16 %v1340
      %v1447 = vunpack.c.l.b16 %v1341
      %v1448 = vunpack.c.h.b16 %v1341
      %v1449 = vunpack.c.l.b16 %v1342
      %v1450 = vunpack.c.h.b16 %v1342
      %v1451 = vpack.c.b16 %v1389, %v1387
      %v1452 = vpack.c.b16 %v1390, %v1388
      %v1453 = vpack.c.b16 %v1393, %v1391
      %v1454 = vpack.c.b16 %v1394, %v1392
      %v1455 = vpack.c.b16 %v1397, %v1395
      %v1456 = vpack.c.b16 %v1398, %v1396
      %v1457 = vpack.c.b16 %v1401, %v1399
      %v1458 = vpack.c.b16 %v1402, %v1400
      %v1459 = vpack.c.b16 %v1405, %v1403
      %v1460 = vpack.c.b16 %v1406, %v1404
      %v1461 = vpack.c.b16 %v1409, %v1407
      %v1462 = vpack.c.b16 %v1410, %v1408
      %v1463 = vpack.c.b16 %v1413, %v1411
      %v1464 = vpack.c.b16 %v1414, %v1412
      %v1465 = vpack.c.b16 %v1417, %v1415
      %v1466 = vpack.c.b16 %v1418, %v1416
      %v1467 = vpack.c.b16 %v1421, %v1419
      %v1468 = vpack.c.b16 %v1422, %v1420
      %v1469 = vpack.c.b16 %v1425, %v1423
      %v1470 = vpack.c.b16 %v1426, %v1424
      %v1471 = vpack.c.b16 %v1429, %v1427
      %v1472 = vpack.c.b16 %v1430, %v1428
      %v1473 = vpack.c.b16 %v1433, %v1431
      %v1474 = vpack.c.b16 %v1434, %v1432
      %v1475 = vpack.c.b16 %v1437, %v1435
      %v1476 = vpack.c.b16 %v1438, %v1436
      %v1477 = vpack.c.b16 %v1441, %v1439
      %v1478 = vpack.c.b16 %v1442, %v1440
      %v1479 = vpack.c.b16 %v1445, %v1443
      %v1480 = vpack.c.b16 %v1446, %v1444
      %v1481 = vpack.c.b16 %v1449, %v1447
      %v1482 = vpack.c.b16 %v1450, %v1448
      %1515 = vmatprep.subr.bf16.mxu0 %v1452
      %1516 = vmatpush1.bf16.msra.mxu0 %v1451
      %1517 = vmatprep.subr.bf16.mxu0 %v1454
      %1518 = vmatpush1.bf16.msra.mxu0 %v1453
      %1519 = vmatprep.subr.bf16.mxu0 %v1456
      %1520 = vmatpush1.bf16.msra.mxu0 %v1455
      %1521 = vmatprep.subr.bf16.mxu0 %v1458
      %1522 = vmatpush1.bf16.msra.mxu0 %v1457
      %1523 = vmatprep.subr.bf16.mxu0 %v1460
      %1524 = vmatpush1.bf16.msra.mxu0 %v1459
      %1525 = vmatprep.subr.bf16.mxu0 %v1462
      %1526 = vmatpush1.bf16.msra.mxu0 %v1461
      %1527 = vmatprep.subr.bf16.mxu0 %v1464
      %1528 = vmatpush1.bf16.msra.mxu0 %v1463
      %1529 = vmatprep.subr.bf16.mxu0 %v1466
      %1530 = vmatpush1.bf16.msra.mxu0 %v1465
      %1531 = vmatprep.subr.bf16.mxu0 %v1468
      %1532 = vmatpush1.bf16.msra.mxu0 %v1467
      %1533 = vmatprep.subr.bf16.mxu0 %v1470
      %1534 = vmatpush1.bf16.msra.mxu0 %v1469
      %1535 = vmatprep.subr.bf16.mxu0 %v1472
      %1536 = vmatpush1.bf16.msra.mxu0 %v1471
      %1537 = vmatprep.subr.bf16.mxu0 %v1474
      %1538 = vmatpush1.bf16.msra.mxu0 %v1473
      %1539 = vmatprep.subr.bf16.mxu0 %v1476
      %1540 = vmatpush1.bf16.msra.mxu0 %v1475
      %1541 = vmatprep.subr.bf16.mxu0 %v1478
      %1542 = vmatpush1.bf16.msra.mxu0 %v1477
      %1543 = vmatprep.subr.bf16.mxu0 %v1480
      %1544 = vmatpush1.bf16.msra.mxu0 %v1479
      %1545 = vmatprep.subr.bf16.mxu0 %v1482
      %1546 = vmatpush1.bf16.msra.mxu0 %v1481
      %1547 = vmatprep.mubr.bf16.mxu0 %v1280
      %1548 = vmatmul.mubr.bf16.gmra.mrb[0].mxu0 %v1279
      %v1549 = vpop.f32.mrb[0].mxu0
      %v1550 = vadd.f32 %v1348, %v1549
      %v1551 = vpop.f32.mrb[0].mxu0
      %v1552 = vadd.f32 %v1352, %v1551
      %v1553 = vpop.f32.mrb[0].mxu0
      %v1554 = vadd.f32 %v1348, %v1553
      %v1555 = vpop.f32.mrb[0].mxu0
      %v1556 = vadd.f32 %v1352, %v1555
      %1557 = vmatprep.mubr.bf16.mxu0 %v1282
      %1558 = vmatmul.mubr.bf16.gmra.mrb[0].mxu0 %v1281
      %v1559 = vpop.f32.mrb[0].mxu0
      %v1560 = vadd.f32 %v1348, %v1559
      %v1561 = vpop.f32.mrb[0].mxu0
      %v1562 = vadd.f32 %v1352, %v1561
      %v1563 = vpop.f32.mrb[0].mxu0
      %v1564 = vadd.f32 %v1348, %v1563
      %v1565 = vpop.f32.mrb[0].mxu0
      %v1566 = vadd.f32 %v1352, %v1565
      %1567 = vmatprep.mubr.bf16.mxu0 %v1284
      %1568 = vmatmul.mubr.bf16.gmra.mrb[0].mxu0 %v1283
      %v1569 = vpop.f32.mrb[0].mxu0
      %v1570 = vadd.f32 %v1348, %v1569
      %v1571 = vpop.f32.mrb[0].mxu0
      %v1572 = vadd.f32 %v1352, %v1571
      %v1573 = vpop.f32.mrb[0].mxu0
      %v1574 = vadd.f32 %v1348, %v1573
      %v1575 = vpop.f32.mrb[0].mxu0
      %v1576 = vadd.f32 %v1352, %v1575
      %1577 = vmatprep.mubr.bf16.mxu0 %v1286
      %1578 = vmatmul.mubr.bf16.gmra.mrb[0].mxu0 %v1285
      %v1579 = vpop.f32.mrb[0].mxu0
      %v1580 = vadd.f32 %v1348, %v1579
      %v1581 = vpop.f32.mrb[0].mxu0
      %v1582 = vadd.f32 %v1352, %v1581
      %v1583 = vpop.f32.mrb[0].mxu0
      %v1584 = vadd.f32 %v1348, %v1583
      %v1585 = vpop.f32.mrb[0].mxu0
      %v1586 = vadd.f32 %v1352, %v1585
      %1587 = vmatprep.mubr.bf16.mxu0 %v1288
      %1588 = vmatmul.mubr.bf16.gmra.mrb[0].mxu0 %v1287
      %v1589 = vpop.f32.mrb[0].mxu0
      %v1590 = vadd.f32 %v1348, %v1589
      %v1591 = vpop.f32.mrb[0].mxu0
      %v1592 = vadd.f32 %v1352, %v1591
      %v1593 = vpop.f32.mrb[0].mxu0
      %v1594 = vadd.f32 %v1348, %v1593
      %v1595 = vpop.f32.mrb[0].mxu0
      %v1596 = vadd.f32 %v1352, %v1595
      %1597 = vmatprep.mubr.bf16.mxu0 %v1290
      %1598 = vmatmul.mubr.bf16.gmra.mrb[0].mxu0 %v1289
      %v1599 = vpop.f32.mrb[0].mxu0
      %v1600 = vadd.f32 %v1348, %v1599
      %v1601 = vpop.f32.mrb[0].mxu0
      %v1602 = vadd.f32 %v1352, %v1601
      %v1603 = vpop.f32.mrb[0].mxu0
      %v1604 = vadd.f32 %v1348, %v1603
      %v1605 = vpop.f32.mrb[0].mxu0
      %v1606 = vadd.f32 %v1352, %v1605
      %1607 = vmatprep.mubr.bf16.mxu0 %v1292
      %1608 = vmatmul.mubr.bf16.gmra.mrb[0].mxu0 %v1291
      %v1609 = vpop.f32.mrb[0].mxu0
      %v1610 = vadd.f32 %v1348, %v1609
      %v1611 = vpop.f32.mrb[0].mxu0
      %v1612 = vadd.f32 %v1352, %v1611
      %v1613 = vpop.f32.mrb[0].mxu0
      %v1614 = vadd.f32 %v1348, %v1613
      %v1615 = vpop.f32.mrb[0].mxu0
      %v1616 = vadd.f32 %v1352, %v1615
      %1617 = vmatprep.mubr.bf16.mxu0 %v1294
      %1618 = vmatmul.mubr.bf16.gmra.mrb[0].mxu0 %v1293
      %v1619 = vpop.f32.mrb[0].mxu0
      %v1620 = vadd.f32 %v1348, %v1619
      %v1621 = vpop.f32.mrb[0].mxu0
      %v1622 = vadd.f32 %v1352, %v1621
      %v1623 = vpop.f32.mrb[0].mxu0
      %v1624 = vadd.f32 %v1348, %v1623
      %v1625 = vpop.f32.mrb[0].mxu0
      %v1626 = vadd.f32 %v1352, %v1625
      %1627 = vmatprep.mubr.bf16.mxu0 %v1296
      %1628 = vmatmul.mubr.bf16.gmra.mrb[0].mxu0 %v1295
      %v1629 = vpop.f32.mrb[0].mxu0
      %v1630 = vadd.f32 %v1348, %v1629
      %v1631 = vpop.f32.mrb[0].mxu0
      %v1632 = vadd.f32 %v1352, %v1631
      %v1633 = vpop.f32.mrb[0].mxu0
      %v1634 = vadd.f32 %v1348, %v1633
      %v1635 = vpop.f32.mrb[0].mxu0
      %v1636 = vadd.f32 %v1352, %v1635
      %1637 = vmatprep.mubr.bf16.mxu0 %v1298
      %1638 = vmatmul.mubr.bf16.gmra.mrb[0].mxu0 %v1297
      %v1639 = vpop.f32.mrb[0].mxu0
      %v1640 = vadd.f32 %v1348, %v1639
      %v1641 = vpop.f32.mrb[0].mxu0
      %v1642 = vadd.f32 %v1352, %v1641
      %v1643 = vpop.f32.mrb[0].mxu0
      %v1644 = vadd.f32 %v1348, %v1643
      %v1645 = vpop.f32.mrb[0].mxu0
      %v1646 = vadd.f32 %v1352, %v1645
      %1647 = vmatprep.mubr.bf16.mxu0 %v1300
      %1648 = vmatmul.mubr.bf16.gmra.mrb[0].mxu0 %v1299
      %v1649 = vpop.f32.mrb[0].mxu0
      %v1650 = vadd.f32 %v1348, %v1649
      %v1651 = vpop.f32.mrb[0].mxu0
      %v1652 = vadd.f32 %v1352, %v1651
      %v1653 = vpop.f32.mrb[0].mxu0
      %v1654 = vadd.f32 %v1348, %v1653
      %v1655 = vpop.f32.mrb[0].mxu0
      %v1656 = vadd.f32 %v1352, %v1655
      %1657 = vmatprep.mubr.bf16.mxu0 %v1302
      %1658 = vmatmul.mubr.bf16.gmra.mrb[0].mxu0 %v1301
      %v1659 = vpop.f32.mrb[0].mxu0
      %v1660 = vadd.f32 %v1348, %v1659
      %v1661 = vpop.f32.mrb[0].mxu0
      %v1662 = vadd.f32 %v1352, %v1661
      %v1663 = vpop.f32.mrb[0].mxu0
      %v1664 = vadd.f32 %v1348, %v1663
      %v1665 = vpop.f32.mrb[0].mxu0
      %v1666 = vadd.f32 %v1352, %v1665
      %1667 = vmatprep.mubr.bf16.mxu0 %v1304
      %1668 = vmatmul.mubr.bf16.gmra.mrb[0].mxu0 %v1303
      %v1669 = vpop.f32.mrb[0].mxu0
      %v1670 = vadd.f32 %v1348, %v1669
      %v1671 = vpop.f32.mrb[0].mxu0
      %v1672 = vadd.f32 %v1352, %v1671
      %v1673 = vpop.f32.mrb[0].mxu0
      %v1674 = vadd.f32 %v1348, %v1673
      %v1675 = vpop.f32.mrb[0].mxu0
      %v1676 = vadd.f32 %v1352, %v1675
      %1677 = vmatprep.mubr.bf16.mxu0 %v1306
      %1678 = vmatmul.mubr.bf16.gmra.mrb[0].mxu0 %v1305
      %v1679 = vpop.f32.mrb[0].mxu0
      %v1680 = vadd.f32 %v1348, %v1679
      %v1681 = vpop.f32.mrb[0].mxu0
      %v1682 = vadd.f32 %v1352, %v1681
      %v1683 = vpop.f32.mrb[0].mxu0
      %v1684 = vadd.f32 %v1348, %v1683
      %v1685 = vpop.f32.mrb[0].mxu0
      %v1686 = vadd.f32 %v1352, %v1685
      %1687 = vmatprep.mubr.bf16.mxu0 %v1308
      %1688 = vmatmul.mubr.bf16.gmra.mrb[0].mxu0 %v1307
      %v1689 = vpop.f32.mrb[0].mxu0
      %v1690 = vadd.f32 %v1348, %v1689
      %v1691 = vpop.f32.mrb[0].mxu0
      %v1692 = vadd.f32 %v1352, %v1691
      %v1693 = vpop.f32.mrb[0].mxu0
      %v1694 = vadd.f32 %v1348, %v1693
      %v1695 = vpop.f32.mrb[0].mxu0
      %v1696 = vadd.f32 %v1352, %v1695
      %1697 = vmatprep.mubr.bf16.mxu0 %v1310
      %1698 = vmatmul.mubr.bf16.gmra.mrb[0].mxu0 %v1309
      %v1699 = vpop.f32.mrb[0].mxu0
      %v1700 = vadd.f32 %v1348, %v1699
      %v1701 = vpop.f32.mrb[0].mxu0
      %v1702 = vadd.f32 %v1352, %v1701
      %v1703 = vpop.f32.mrb[0].mxu0
      %v1704 = vadd.f32 %v1348, %v1703
      %v1705 = vpop.f32.mrb[0].mxu0
      %v1706 = vadd.f32 %v1352, %v1705
      %1707 = vdwg.mxu0
      %v1708 = vmax.f32 %v1550, 0.0
      %v1709 = vmax.f32 %v1552, 0.0
      %v1710 = vmax.f32 %v1554, 0.0
      %v1711 = vmax.f32 %v1556, 0.0
      %v1712 = vmax.f32 %v1560, 0.0
      %v1713 = vmax.f32 %v1562, 0.0
      %v1714 = vmax.f32 %v1564, 0.0
      %v1715 = vmax.f32 %v1566, 0.0
      %v1716 = vmax.f32 %v1570, 0.0
      %v1717 = vmax.f32 %v1572, 0.0
      %v1718 = vmax.f32 %v1574, 0.0
      %v1719 = vmax.f32 %v1576, 0.0
      %v1720 = vmax.f32 %v1580, 0.0
      %v1721 = vmax.f32 %v1582, 0.0
      %v1722 = vmax.f32 %v1584, 0.0
      %v1723 = vmax.f32 %v1586, 0.0
      %v1724 = vmax.f32 %v1590, 0.0
      %v1725 = vmax.f32 %v1592, 0.0
      %v1726 = vmax.f32 %v1594, 0.0
      %v1727 = vmax.f32 %v1596, 0.0
      %v1728 = vmax.f32 %v1600, 0.0
      %v1729 = vmax.f32 %v1602, 0.0
      %v1730 = vmax.f32 %v1604, 0.0
      %v1731 = vmax.f32 %v1606, 0.0
      %v1732 = vmax.f32 %v1610, 0.0
      %v1733 = vmax.f32 %v1612, 0.0
      %v1734 = vmax.f32 %v1614, 0.0
      %v1735 = vmax.f32 %v1616, 0.0
      %v1736 = vmax.f32 %v1620, 0.0
      %v1737 = vmax.f32 %v1622, 0.0
      %v1738 = vmax.f32 %v1624, 0.0
      %v1739 = vmax.f32 %v1626, 0.0
      %v1740 = vmax.f32 %v1630, 0.0
      %v1741 = vmax.f32 %v1632, 0.0
      %v1742 = vmax.f32 %v1634, 0.0
      %v1743 = vmax.f32 %v1636, 0.0
      %v1744 = vmax.f32 %v1640, 0.0
      %v1745 = vmax.f32 %v1642, 0.0
      %v1746 = vmax.f32 %v1644, 0.0
      %v1747 = vmax.f32 %v1646, 0.0
      %v1748 = vmax.f32 %v1650, 0.0
      %v1749 = vmax.f32 %v1652, 0.0
      %v1750 = vmax.f32 %v1654, 0.0
      %v1751 = vmax.f32 %v1656, 0.0
      %v1752 = vmax.f32 %v1660, 0.0
      %v1753 = vmax.f32 %v1662, 0.0
      %v1754 = vmax.f32 %v1664, 0.0
      %v1755 = vmax.f32 %v1666, 0.0
      %v1756 = vmax.f32 %v1670, 0.0
      %v1757 = vmax.f32 %v1672, 0.0
      %v1758 = vmax.f32 %v1674, 0.0
      %v1759 = vmax.f32 %v1676, 0.0
      %v1760 = vmax.f32 %v1680, 0.0
      %v1761 = vmax.f32 %v1682, 0.0
      %v1762 = vmax.f32 %v1684, 0.0
      %v1763 = vmax.f32 %v1686, 0.0
      %v1764 = vmax.f32 %v1690, 0.0
      %v1765 = vmax.f32 %v1692, 0.0
      %v1766 = vmax.f32 %v1694, 0.0
      %v1767 = vmax.f32 %v1696, 0.0
      %v1768 = vmax.f32 %v1700, 0.0
      %v1769 = vmax.f32 %v1702, 0.0
      %v1770 = vmax.f32 %v1704, 0.0
      %v1771 = vmax.f32 %v1706, 0.0
      %v1772 = vpack.c.bf16 %v1710, %v1708
      %v1773 = vpack.c.bf16 %v1711, %v1709
      %v1774 = vpack.c.bf16 %v1714, %v1712
      %v1775 = vpack.c.bf16 %v1715, %v1713
      %v1776 = vpack.c.bf16 %v1718, %v1716
      %v1777 = vpack.c.bf16 %v1719, %v1717
      %v1778 = vpack.c.bf16 %v1722, %v1720
      %v1779 = vpack.c.bf16 %v1723, %v1721
      %v1780 = vpack.c.bf16 %v1726, %v1724
      %v1781 = vpack.c.bf16 %v1727, %v1725
      %v1782 = vpack.c.bf16 %v1730, %v1728
      %v1783 = vpack.c.bf16 %v1731, %v1729
      %v1784 = vpack.c.bf16 %v1734, %v1732
      %v1785 = vpack.c.bf16 %v1735, %v1733
      %v1786 = vpack.c.bf16 %v1738, %v1736
      %v1787 = vpack.c.bf16 %v1739, %v1737
      %v1788 = vpack.c.bf16 %v1742, %v1740
      %v1789 = vpack.c.bf16 %v1743, %v1741
      %v1790 = vpack.c.bf16 %v1746, %v1744
      %v1791 = vpack.c.bf16 %v1747, %v1745
      %v1792 = vpack.c.bf16 %v1750, %v1748
      %v1793 = vpack.c.bf16 %v1751, %v1749
      %v1794 = vpack.c.bf16 %v1754, %v1752
      %v1795 = vpack.c.bf16 %v1755, %v1753
      %v1796 = vpack.c.bf16 %v1758, %v1756
      %v1797 = vpack.c.bf16 %v1759, %v1757
      %v1798 = vpack.c.bf16 %v1762, %v1760
      %v1799 = vpack.c.bf16 %v1763, %v1761
      %v1800 = vpack.c.bf16 %v1766, %v1764
      %v1801 = vpack.c.bf16 %v1767, %v1765
      %v1802 = vpack.c.bf16 %v1770, %v1768
      %v1803 = vpack.c.bf16 %v1771, %v1769
      %v1804 = vld [vmem:[%s7] sm:$0xff]
      %v1805 = vld [vmem:[%s7 + $0x8] sm:$0xff]
      %v1806 = vld [vmem:[%s7 + $0x10] sm:$0xff]
      %v1807 = vld [vmem:[%s7 + $0x18] sm:$0xff]
      %v1808 = vld [vmem:[%s7 + $0x20] sm:$0xff]
      %v1809 = vld [vmem:[%s7 + $0x28] sm:$0xff]
      %v1810 = vld [vmem:[%s7 + $0x30] sm:$0xff]
      %v1811 = vld [vmem:[%s7 + $0x38] sm:$0xff]
      %v1812 = vld [vmem:[%s7 + $0x40] sm:$0xff]
      %v1813 = vld [vmem:[%s7 + $0x48] sm:$0xff]
      %v1814 = vld [vmem:[%s7 + $0x50] sm:$0xff]
      %v1815 = vld [vmem:[%s7 + $0x58] sm:$0xff]
      %v1816 = vld [vmem:[%s7 + $0x60] sm:$0xff]
      %v1817 = vld [vmem:[%s7 + $0x68] sm:$0xff]
      %v1818 = vld [vmem:[%s7 + $0x70] sm:$0xff]
      %v1819 = vld [vmem:[%s7 + $0x78] sm:$0xff]
      %v1820 = vld [vmem:[%s7 + $0x80] sm:$0xff]
      %v1821 = vld [vmem:[%s7 + $0x88] sm:$0xff]
      %v1822 = vld [vmem:[%s7 + $0x90] sm:$0xff]
      %v1823 = vld [vmem:[%s7 + $0x98] sm:$0xff]
      %v1824 = vld [vmem:[%s7 + $0xa0] sm:$0xff]
      %v1825 = vld [vmem:[%s7 + $0xa8] sm:$0xff]
      %v1826 = vld [vmem:[%s7 + $0xb0] sm:$0xff]
      %v1827 = vld [vmem:[%s7 + $0xb8] sm:$0xff]
      %v1828 = vld [vmem:[%s7 + $0xc0] sm:$0xff]
      %v1829 = vld [vmem:[%s7 + $0xc8] sm:$0xff]
      %v1830 = vld [vmem:[%s7 + $0xd0] sm:$0xff]
      %v1831 = vld [vmem:[%s7 + $0xd8] sm:$0xff]
      %v1832 = vld [vmem:[%s7 + $0xe0] sm:$0xff]
      %v1833 = vld [vmem:[%s7 + $0xe8] sm:$0xff]
      %v1834 = vld [vmem:[%s7 + $0xf0] sm:$0xff]
      %v1835 = vld [vmem:[%s7 + $0xf8] sm:$0xff]
      %v1836 = vld [vmem:[%s8] sm:$0x3]
      %v1838 = vlaneseq
      %v1839 = vshrl.u32 %v1838, 7
      %v1840 = vsub.s32 0, %v1839
      %v1841 = vrot.slane %v1836, %v1840
      %v1842 = vlaneseq
      %v1843 = vshrl.u32 %v1842, 7
      %v1844 = vsub.s32 1, %v1843
      %v1845 = vrot.slane %v1836, %v1844
      %v1880 = vunpack.c.l.b16 %v1804
      %v1881 = vunpack.c.h.b16 %v1804
      %v1882 = vunpack.c.l.b16 %v1805
      %v1883 = vunpack.c.h.b16 %v1805
      %v1884 = vunpack.c.l.b16 %v1806
      %v1885 = vunpack.c.h.b16 %v1806
      %v1886 = vunpack.c.l.b16 %v1807
      %v1887 = vunpack.c.h.b16 %v1807
      %v1888 = vunpack.c.l.b16 %v1808
      %v1889 = vunpack.c.h.b16 %v1808
      %v1890 = vunpack.c.l.b16 %v1809
      %v1891 = vunpack.c.h.b16 %v1809
      %v1892 = vunpack.c.l.b16 %v1810
      %v1893 = vunpack.c.h.b16 %v1810
      %v1894 = vunpack.c.l.b16 %v1811
      %v1895 = vunpack.c.h.b16 %v1811
      %v1896 = vunpack.c.l.b16 %v1812
      %v1897 = vunpack.c.h.b16 %v1812
      %v1898 = vunpack.c.l.b16 %v1813
      %v1899 = vunpack.c.h.b16 %v1813
      %v1900 = vunpack.c.l.b16 %v1814
      %v1901 = vunpack.c.h.b16 %v1814
      %v1902 = vunpack.c.l.b16 %v1815
      %v1903 = vunpack.c.h.b16 %v1815
      %v1904 = vunpack.c.l.b16 %v1816
      %v1905 = vunpack.c.h.b16 %v1816
      %v1906 = vunpack.c.l.b16 %v1817
      %v1907 = vunpack.c.h.b16 %v1817
      %v1908 = vunpack.c.l.b16 %v1818
      %v1909 = vunpack.c.h.b16 %v1818
      %v1910 = vunpack.c.l.b16 %v1819
      %v1911 = vunpack.c.h.b16 %v1819
      %v1912 = vunpack.c.l.b16 %v1820
      %v1913 = vunpack.c.h.b16 %v1820
      %v1914 = vunpack.c.l.b16 %v1821
      %v1915 = vunpack.c.h.b16 %v1821
      %v1916 = vunpack.c.l.b16 %v1822
      %v1917 = vunpack.c.h.b16 %v1822
      %v1918 = vunpack.c.l.b16 %v1823
      %v1919 = vunpack.c.h.b16 %v1823
      %v1920 = vunpack.c.l.b16 %v1824
      %v1921 = vunpack.c.h.b16 %v1824
      %v1922 = vunpack.c.l.b16 %v1825
      %v1923 = vunpack.c.h.b16 %v1825
      %v1924 = vunpack.c.l.b16 %v1826
      %v1925 = vunpack.c.h.b16 %v1826
      %v1926 = vunpack.c.l.b16 %v1827
      %v1927 = vunpack.c.h.b16 %v1827
      %v1928 = vunpack.c.l.b16 %v1828
      %v1929 = vunpack.c.h.b16 %v1828
      %v1930 = vunpack.c.l.b16 %v1829
      %v1931 = vunpack.c.h.b16 %v1829
      %v1932 = vunpack.c.l.b16 %v1830
      %v1933 = vunpack.c.h.b16 %v1830
      %v1934 = vunpack.c.l.b16 %v1831
      %v1935 = vunpack.c.h.b16 %v1831
      %v1936 = vunpack.c.l.b16 %v1832
      %v1937 = vunpack.c.h.b16 %v1832
      %v1938 = vunpack.c.l.b16 %v1833
      %v1939 = vunpack.c.h.b16 %v1833
      %v1940 = vunpack.c.l.b16 %v1834
      %v1941 = vunpack.c.h.b16 %v1834
      %v1942 = vunpack.c.l.b16 %v1835
      %v1943 = vunpack.c.h.b16 %v1835
      %v1944 = vpack.c.b16 %v1882, %v1880
      %v1945 = vpack.c.b16 %v1883, %v1881
      %v1946 = vpack.c.b16 %v1886, %v1884
      %v1947 = vpack.c.b16 %v1887, %v1885
      %v1948 = vpack.c.b16 %v1890, %v1888
      %v1949 = vpack.c.b16 %v1891, %v1889
      %v1950 = vpack.c.b16 %v1894, %v1892
      %v1951 = vpack.c.b16 %v1895, %v1893
      %v1952 = vpack.c.b16 %v1898, %v1896
      %v1953 = vpack.c.b16 %v1899, %v1897
      %v1954 = vpack.c.b16 %v1902, %v1900
      %v1955 = vpack.c.b16 %v1903, %v1901
      %v1956 = vpack.c.b16 %v1906, %v1904
      %v1957 = vpack.c.b16 %v1907, %v1905
      %v1958 = vpack.c.b16 %v1910, %v1908
      %v1959 = vpack.c.b16 %v1911, %v1909
      %v1960 = vpack.c.b16 %v1914, %v1912
      %v1961 = vpack.c.b16 %v1915, %v1913
      %v1962 = vpack.c.b16 %v1918, %v1916
      %v1963 = vpack.c.b16 %v1919, %v1917
      %v1964 = vpack.c.b16 %v1922, %v1920
      %v1965 = vpack.c.b16 %v1923, %v1921
      %v1966 = vpack.c.b16 %v1926, %v1924
      %v1967 = vpack.c.b16 %v1927, %v1925
      %v1968 = vpack.c.b16 %v1930, %v1928
      %v1969 = vpack.c.b16 %v1931, %v1929
      %v1970 = vpack.c.b16 %v1934, %v1932
      %v1971 = vpack.c.b16 %v1935, %v1933
      %v1972 = vpack.c.b16 %v1938, %v1936
      %v1973 = vpack.c.b16 %v1939, %v1937
      %v1974 = vpack.c.b16 %v1942, %v1940
      %v1975 = vpack.c.b16 %v1943, %v1941
      %2008 = vmatprep.subr.bf16.mxu0 %v1945
      %2009 = vmatpush1.bf16.msra.mxu0 %v1944
      %2010 = vmatprep.subr.bf16.mxu0 %v1947
      %2011 = vmatpush1.bf16.msra.mxu0 %v1946
      %2012 = vmatprep.subr.bf16.mxu0 %v1949
      %2013 = vmatpush1.bf16.msra.mxu0 %v1948
      %2014 = vmatprep.subr.bf16.mxu0 %v1951
      %2015 = vmatpush1.bf16.msra.mxu0 %v1950
      %2016 = vmatprep.subr.bf16.mxu0 %v1953
      %2017 = vmatpush1.bf16.msra.mxu0 %v1952
      %2018 = vmatprep.subr.bf16.mxu0 %v1955
      %2019 = vmatpush1.bf16.msra.mxu0 %v1954
      %2020 = vmatprep.subr.bf16.mxu0 %v1957
      %2021 = vmatpush1.bf16.msra.mxu0 %v1956
      %2022 = vmatprep.subr.bf16.mxu0 %v1959
      %2023 = vmatpush1.bf16.msra.mxu0 %v1958
      %2024 = vmatprep.subr.bf16.mxu0 %v1961
      %2025 = vmatpush1.bf16.msra.mxu0 %v1960
      %2026 = vmatprep.subr.bf16.mxu0 %v1963
      %2027 = vmatpush1.bf16.msra.mxu0 %v1962
      %2028 = vmatprep.subr.bf16.mxu0 %v1965
      %2029 = vmatpush1.bf16.msra.mxu0 %v1964
      %2030 = vmatprep.subr.bf16.mxu0 %v1967
      %2031 = vmatpush1.bf16.msra.mxu0 %v1966
      %2032 = vmatprep.subr.bf16.mxu0 %v1969
      %2033 = vmatpush1.bf16.msra.mxu0 %v1968
      %2034 = vmatprep.subr.bf16.mxu0 %v1971
      %2035 = vmatpush1.bf16.msra.mxu0 %v1970
      %2036 = vmatprep.subr.bf16.mxu0 %v1973
      %2037 = vmatpush1.bf16.msra.mxu0 %v1972
      %2038 = vmatprep.subr.bf16.mxu0 %v1975
      %2039 = vmatpush1.bf16.msra.mxu0 %v1974
      %2040 = vmatprep.mubr.bf16.mxu0 %v1773
      %2041 = vmatmul.mubr.bf16.gmra.mrb[0].mxu0 %v1772
      %v2042 = vpop.f32.mrb[0].mxu0
      %v2043 = vadd.f32 %v1841, %v2042
      %v2044 = vpop.f32.mrb[0].mxu0
      %v2045 = vadd.f32 %v1845, %v2044
      %v2046 = vpop.f32.mrb[0].mxu0
      %v2047 = vadd.f32 %v1841, %v2046
      %v2048 = vpop.f32.mrb[0].mxu0
      %v2049 = vadd.f32 %v1845, %v2048
      %2050 = vmatprep.mubr.bf16.mxu0 %v1775
      %2051 = vmatmul.mubr.bf16.gmra.mrb[0].mxu0 %v1774
      %v2052 = vpop.f32.mrb[0].mxu0
      %v2053 = vadd.f32 %v1841, %v2052
      %v2054 = vpop.f32.mrb[0].mxu0
      %v2055 = vadd.f32 %v1845, %v2054
      %v2056 = vpop.f32.mrb[0].mxu0
      %v2057 = vadd.f32 %v1841, %v2056
      %v2058 = vpop.f32.mrb[0].mxu0
      %v2059 = vadd.f32 %v1845, %v2058
      %2060 = vmatprep.mubr.bf16.mxu0 %v1777
      %2061 = vmatmul.mubr.bf16.gmra.mrb[0].mxu0 %v1776
      %v2062 = vpop.f32.mrb[0].mxu0
      %v2063 = vadd.f32 %v1841, %v2062
      %v2064 = vpop.f32.mrb[0].mxu0
      %v2065 = vadd.f32 %v1845, %v2064
      %v2066 = vpop.f32.mrb[0].mxu0
      %v2067 = vadd.f32 %v1841, %v2066
      %v2068 = vpop.f32.mrb[0].mxu0
      %v2069 = vadd.f32 %v1845, %v2068
      %2070 = vmatprep.mubr.bf16.mxu0 %v1779
      %2071 = vmatmul.mubr.bf16.gmra.mrb[0].mxu0 %v1778
      %v2072 = vpop.f32.mrb[0].mxu0
      %v2073 = vadd.f32 %v1841, %v2072
      %v2074 = vpop.f32.mrb[0].mxu0
      %v2075 = vadd.f32 %v1845, %v2074
      %v2076 = vpop.f32.mrb[0].mxu0
      %v2077 = vadd.f32 %v1841, %v2076
      %v2078 = vpop.f32.mrb[0].mxu0
      %v2079 = vadd.f32 %v1845, %v2078
      %2080 = vmatprep.mubr.bf16.mxu0 %v1781
      %2081 = vmatmul.mubr.bf16.gmra.mrb[0].mxu0 %v1780
      %v2082 = vpop.f32.mrb[0].mxu0
      %v2083 = vadd.f32 %v1841, %v2082
      %v2084 = vpop.f32.mrb[0].mxu0
      %v2085 = vadd.f32 %v1845, %v2084
      %v2086 = vpop.f32.mrb[0].mxu0
      %v2087 = vadd.f32 %v1841, %v2086
      %v2088 = vpop.f32.mrb[0].mxu0
      %v2089 = vadd.f32 %v1845, %v2088
      %2090 = vmatprep.mubr.bf16.mxu0 %v1783
      %2091 = vmatmul.mubr.bf16.gmra.mrb[0].mxu0 %v1782
      %v2092 = vpop.f32.mrb[0].mxu0
      %v2093 = vadd.f32 %v1841, %v2092
      %v2094 = vpop.f32.mrb[0].mxu0
      %v2095 = vadd.f32 %v1845, %v2094
      %v2096 = vpop.f32.mrb[0].mxu0
      %v2097 = vadd.f32 %v1841, %v2096
      %v2098 = vpop.f32.mrb[0].mxu0
      %v2099 = vadd.f32 %v1845, %v2098
      %2100 = vmatprep.mubr.bf16.mxu0 %v1785
      %2101 = vmatmul.mubr.bf16.gmra.mrb[0].mxu0 %v1784
      %v2102 = vpop.f32.mrb[0].mxu0
      %v2103 = vadd.f32 %v1841, %v2102
      %v2104 = vpop.f32.mrb[0].mxu0
      %v2105 = vadd.f32 %v1845, %v2104
      %v2106 = vpop.f32.mrb[0].mxu0
      %v2107 = vadd.f32 %v1841, %v2106
      %v2108 = vpop.f32.mrb[0].mxu0
      %v2109 = vadd.f32 %v1845, %v2108
      %2110 = vmatprep.mubr.bf16.mxu0 %v1787
      %2111 = vmatmul.mubr.bf16.gmra.mrb[0].mxu0 %v1786
      %v2112 = vpop.f32.mrb[0].mxu0
      %v2113 = vadd.f32 %v1841, %v2112
      %v2114 = vpop.f32.mrb[0].mxu0
      %v2115 = vadd.f32 %v1845, %v2114
      %v2116 = vpop.f32.mrb[0].mxu0
      %v2117 = vadd.f32 %v1841, %v2116
      %v2118 = vpop.f32.mrb[0].mxu0
      %v2119 = vadd.f32 %v1845, %v2118
      %2120 = vmatprep.mubr.bf16.mxu0 %v1789
      %2121 = vmatmul.mubr.bf16.gmra.mrb[0].mxu0 %v1788
      %v2122 = vpop.f32.mrb[0].mxu0
      %v2123 = vadd.f32 %v1841, %v2122
      %v2124 = vpop.f32.mrb[0].mxu0
      %v2125 = vadd.f32 %v1845, %v2124
      %v2126 = vpop.f32.mrb[0].mxu0
      %v2127 = vadd.f32 %v1841, %v2126
      %v2128 = vpop.f32.mrb[0].mxu0
      %v2129 = vadd.f32 %v1845, %v2128
      %2130 = vmatprep.mubr.bf16.mxu0 %v1791
      %2131 = vmatmul.mubr.bf16.gmra.mrb[0].mxu0 %v1790
      %v2132 = vpop.f32.mrb[0].mxu0
      %v2133 = vadd.f32 %v1841, %v2132
      %v2134 = vpop.f32.mrb[0].mxu0
      %v2135 = vadd.f32 %v1845, %v2134
      %v2136 = vpop.f32.mrb[0].mxu0
      %v2137 = vadd.f32 %v1841, %v2136
      %v2138 = vpop.f32.mrb[0].mxu0
      %v2139 = vadd.f32 %v1845, %v2138
      %2140 = vmatprep.mubr.bf16.mxu0 %v1793
      %2141 = vmatmul.mubr.bf16.gmra.mrb[0].mxu0 %v1792
      %v2142 = vpop.f32.mrb[0].mxu0
      %v2143 = vadd.f32 %v1841, %v2142
      %v2144 = vpop.f32.mrb[0].mxu0
      %v2145 = vadd.f32 %v1845, %v2144
      %v2146 = vpop.f32.mrb[0].mxu0
      %v2147 = vadd.f32 %v1841, %v2146
      %v2148 = vpop.f32.mrb[0].mxu0
      %v2149 = vadd.f32 %v1845, %v2148
      %2150 = vmatprep.mubr.bf16.mxu0 %v1795
      %2151 = vmatmul.mubr.bf16.gmra.mrb[0].mxu0 %v1794
      %v2152 = vpop.f32.mrb[0].mxu0
      %v2153 = vadd.f32 %v1841, %v2152
      %v2154 = vpop.f32.mrb[0].mxu0
      %v2155 = vadd.f32 %v1845, %v2154
      %v2156 = vpop.f32.mrb[0].mxu0
      %v2157 = vadd.f32 %v1841, %v2156
      %v2158 = vpop.f32.mrb[0].mxu0
      %v2159 = vadd.f32 %v1845, %v2158
      %2160 = vmatprep.mubr.bf16.mxu0 %v1797
      %2161 = vmatmul.mubr.bf16.gmra.mrb[0].mxu0 %v1796
      %v2162 = vpop.f32.mrb[0].mxu0
      %v2163 = vadd.f32 %v1841, %v2162
      %v2164 = vpop.f32.mrb[0].mxu0
      %v2165 = vadd.f32 %v1845, %v2164
      %v2166 = vpop.f32.mrb[0].mxu0
      %v2167 = vadd.f32 %v1841, %v2166
      %v2168 = vpop.f32.mrb[0].mxu0
      %v2169 = vadd.f32 %v1845, %v2168
      %2170 = vmatprep.mubr.bf16.mxu0 %v1799
      %2171 = vmatmul.mubr.bf16.gmra.mrb[0].mxu0 %v1798
      %v2172 = vpop.f32.mrb[0].mxu0
      %v2173 = vadd.f32 %v1841, %v2172
      %v2174 = vpop.f32.mrb[0].mxu0
      %v2175 = vadd.f32 %v1845, %v2174
      %v2176 = vpop.f32.mrb[0].mxu0
      %v2177 = vadd.f32 %v1841, %v2176
      %v2178 = vpop.f32.mrb[0].mxu0
      %v2179 = vadd.f32 %v1845, %v2178
      %2180 = vmatprep.mubr.bf16.mxu0 %v1801
      %2181 = vmatmul.mubr.bf16.gmra.mrb[0].mxu0 %v1800
      %v2182 = vpop.f32.mrb[0].mxu0
      %v2183 = vadd.f32 %v1841, %v2182
      %v2184 = vpop.f32.mrb[0].mxu0
      %v2185 = vadd.f32 %v1845, %v2184
      %v2186 = vpop.f32.mrb[0].mxu0
      %v2187 = vadd.f32 %v1841, %v2186
      %v2188 = vpop.f32.mrb[0].mxu0
      %v2189 = vadd.f32 %v1845, %v2188
      %2190 = vmatprep.mubr.bf16.mxu0 %v1803
      %2191 = vmatmul.mubr.bf16.gmra.mrb[0].mxu0 %v1802
      %v2192 = vpop.f32.mrb[0].mxu0
      %v2193 = vadd.f32 %v1841, %v2192
      %v2194 = vpop.f32.mrb[0].mxu0
      %v2195 = vadd.f32 %v1845, %v2194
      %v2196 = vpop.f32.mrb[0].mxu0
      %v2197 = vadd.f32 %v1841, %v2196
      %v2198 = vpop.f32.mrb[0].mxu0
      %v2199 = vadd.f32 %v1845, %v2198
      %2200 = vdwg.mxu0
      %v2201 = vmax.f32 %v2043, 0.0
      %v2202 = vmax.f32 %v2045, 0.0
      %v2203 = vmax.f32 %v2047, 0.0
      %v2204 = vmax.f32 %v2049, 0.0
      %v2205 = vmax.f32 %v2053, 0.0
      %v2206 = vmax.f32 %v2055, 0.0
      %v2207 = vmax.f32 %v2057, 0.0
      %v2208 = vmax.f32 %v2059, 0.0
      %v2209 = vmax.f32 %v2063, 0.0
      %v2210 = vmax.f32 %v2065, 0.0
      %v2211 = vmax.f32 %v2067, 0.0
      %v2212 = vmax.f32 %v2069, 0.0
      %v2213 = vmax.f32 %v2073, 0.0
      %v2214 = vmax.f32 %v2075, 0.0
      %v2215 = vmax.f32 %v2077, 0.0
      %v2216 = vmax.f32 %v2079, 0.0
      %v2217 = vmax.f32 %v2083, 0.0
      %v2218 = vmax.f32 %v2085, 0.0
      %v2219 = vmax.f32 %v2087, 0.0
      %v2220 = vmax.f32 %v2089, 0.0
      %v2221 = vmax.f32 %v2093, 0.0
      %v2222 = vmax.f32 %v2095, 0.0
      %v2223 = vmax.f32 %v2097, 0.0
      %v2224 = vmax.f32 %v2099, 0.0
      %v2225 = vmax.f32 %v2103, 0.0
      %v2226 = vmax.f32 %v2105, 0.0
      %v2227 = vmax.f32 %v2107, 0.0
      %v2228 = vmax.f32 %v2109, 0.0
      %v2229 = vmax.f32 %v2113, 0.0
      %v2230 = vmax.f32 %v2115, 0.0
      %v2231 = vmax.f32 %v2117, 0.0
      %v2232 = vmax.f32 %v2119, 0.0
      %v2233 = vmax.f32 %v2123, 0.0
      %v2234 = vmax.f32 %v2125, 0.0
      %v2235 = vmax.f32 %v2127, 0.0
      %v2236 = vmax.f32 %v2129, 0.0
      %v2237 = vmax.f32 %v2133, 0.0
      %v2238 = vmax.f32 %v2135, 0.0
      %v2239 = vmax.f32 %v2137, 0.0
      %v2240 = vmax.f32 %v2139, 0.0
      %v2241 = vmax.f32 %v2143, 0.0
      %v2242 = vmax.f32 %v2145, 0.0
      %v2243 = vmax.f32 %v2147, 0.0
      %v2244 = vmax.f32 %v2149, 0.0
      %v2245 = vmax.f32 %v2153, 0.0
      %v2246 = vmax.f32 %v2155, 0.0
      %v2247 = vmax.f32 %v2157, 0.0
      %v2248 = vmax.f32 %v2159, 0.0
      %v2249 = vmax.f32 %v2163, 0.0
      %v2250 = vmax.f32 %v2165, 0.0
      %v2251 = vmax.f32 %v2167, 0.0
      %v2252 = vmax.f32 %v2169, 0.0
      %v2253 = vmax.f32 %v2173, 0.0
      %v2254 = vmax.f32 %v2175, 0.0
      %v2255 = vmax.f32 %v2177, 0.0
      %v2256 = vmax.f32 %v2179, 0.0
      %v2257 = vmax.f32 %v2183, 0.0
      %v2258 = vmax.f32 %v2185, 0.0
      %v2259 = vmax.f32 %v2187, 0.0
      %v2260 = vmax.f32 %v2189, 0.0
      %v2261 = vmax.f32 %v2193, 0.0
      %v2262 = vmax.f32 %v2195, 0.0
      %v2263 = vmax.f32 %v2197, 0.0
      %v2264 = vmax.f32 %v2199, 0.0
      %v2265 = vpack.c.bf16 %v2203, %v2201
      %v2266 = vpack.c.bf16 %v2204, %v2202
      %v2267 = vpack.c.bf16 %v2207, %v2205
      %v2268 = vpack.c.bf16 %v2208, %v2206
      %v2269 = vpack.c.bf16 %v2211, %v2209
      %v2270 = vpack.c.bf16 %v2212, %v2210
      %v2271 = vpack.c.bf16 %v2215, %v2213
      %v2272 = vpack.c.bf16 %v2216, %v2214
      %v2273 = vpack.c.bf16 %v2219, %v2217
      %v2274 = vpack.c.bf16 %v2220, %v2218
      %v2275 = vpack.c.bf16 %v2223, %v2221
      %v2276 = vpack.c.bf16 %v2224, %v2222
      %v2277 = vpack.c.bf16 %v2227, %v2225
      %v2278 = vpack.c.bf16 %v2228, %v2226
      %v2279 = vpack.c.bf16 %v2231, %v2229
      %v2280 = vpack.c.bf16 %v2232, %v2230
      %v2281 = vpack.c.bf16 %v2235, %v2233
      %v2282 = vpack.c.bf16 %v2236, %v2234
      %v2283 = vpack.c.bf16 %v2239, %v2237
      %v2284 = vpack.c.bf16 %v2240, %v2238
      %v2285 = vpack.c.bf16 %v2243, %v2241
      %v2286 = vpack.c.bf16 %v2244, %v2242
      %v2287 = vpack.c.bf16 %v2247, %v2245
      %v2288 = vpack.c.bf16 %v2248, %v2246
      %v2289 = vpack.c.bf16 %v2251, %v2249
      %v2290 = vpack.c.bf16 %v2252, %v2250
      %v2291 = vpack.c.bf16 %v2255, %v2253
      %v2292 = vpack.c.bf16 %v2256, %v2254
      %v2293 = vpack.c.bf16 %v2259, %v2257
      %v2294 = vpack.c.bf16 %v2260, %v2258
      %v2295 = vpack.c.bf16 %v2263, %v2261
      %v2296 = vpack.c.bf16 %v2264, %v2262
      %v2297 = vld [vmem:[%s9] sm:$0xf]
      %v2298 = vld [vmem:[%s9 + $0x4] sm:$0xf]
      %v2299 = vld [vmem:[%s9 + $0x8] sm:$0xf]
      %v2300 = vld [vmem:[%s9 + $0xc] sm:$0xf]
      %v2301 = vld [vmem:[%s9 + $0x10] sm:$0xf]
      %v2302 = vld [vmem:[%s9 + $0x14] sm:$0xf]
      %v2303 = vld [vmem:[%s9 + $0x18] sm:$0xf]
      %v2304 = vld [vmem:[%s9 + $0x1c] sm:$0xf]
      %v2305 = vld [vmem:[%s9 + $0x20] sm:$0xf]
      %v2306 = vld [vmem:[%s9 + $0x24] sm:$0xf]
      %v2307 = vld [vmem:[%s9 + $0x28] sm:$0xf]
      %v2308 = vld [vmem:[%s9 + $0x2c] sm:$0xf]
      %v2309 = vld [vmem:[%s9 + $0x30] sm:$0xf]
      %v2310 = vld [vmem:[%s9 + $0x34] sm:$0xf]
      %v2311 = vld [vmem:[%s9 + $0x38] sm:$0xf]
      %v2312 = vld [vmem:[%s9 + $0x3c] sm:$0xf]
      %v2313 = vld [vmem:[%s9 + $0x40] sm:$0xf]
      %v2314 = vld [vmem:[%s9 + $0x44] sm:$0xf]
      %v2315 = vld [vmem:[%s9 + $0x48] sm:$0xf]
      %v2316 = vld [vmem:[%s9 + $0x4c] sm:$0xf]
      %v2317 = vld [vmem:[%s9 + $0x50] sm:$0xf]
      %v2318 = vld [vmem:[%s9 + $0x54] sm:$0xf]
      %v2319 = vld [vmem:[%s9 + $0x58] sm:$0xf]
      %v2320 = vld [vmem:[%s9 + $0x5c] sm:$0xf]
      %v2321 = vld [vmem:[%s9 + $0x60] sm:$0xf]
      %v2322 = vld [vmem:[%s9 + $0x64] sm:$0xf]
      %v2323 = vld [vmem:[%s9 + $0x68] sm:$0xf]
      %v2324 = vld [vmem:[%s9 + $0x6c] sm:$0xf]
      %v2325 = vld [vmem:[%s9 + $0x70] sm:$0xf]
      %v2326 = vld [vmem:[%s9 + $0x74] sm:$0xf]
      %v2327 = vld [vmem:[%s9 + $0x78] sm:$0xf]
      %v2328 = vld [vmem:[%s9 + $0x7c] sm:$0xf]
      %v2329 = vld [vmem:[%s10] sm:$0x1]
      %v2331 = vlaneseq
      %v2332 = vshrl.u32 %v2331, 7
      %v2333 = vsub.s32 0, %v2332
      %v2334 = vrot.slane %v2329, %v2333
      %v2368 = vunpack.c.l.b16 %v2297
      %v2369 = vunpack.c.l.b16 %v2298
      %v2370 = vunpack.c.l.b16 %v2299
      %v2371 = vunpack.c.l.b16 %v2300
      %v2372 = vunpack.c.l.b16 %v2301
      %v2373 = vunpack.c.l.b16 %v2302
      %v2374 = vunpack.c.l.b16 %v2303
      %v2375 = vunpack.c.l.b16 %v2304
      %v2376 = vunpack.c.l.b16 %v2305
      %v2377 = vunpack.c.l.b16 %v2306
      %v2378 = vunpack.c.l.b16 %v2307
      %v2379 = vunpack.c.l.b16 %v2308
      %v2380 = vunpack.c.l.b16 %v2309
      %v2381 = vunpack.c.l.b16 %v2310
      %v2382 = vunpack.c.l.b16 %v2311
      %v2383 = vunpack.c.l.b16 %v2312
      %v2384 = vunpack.c.l.b16 %v2313
      %v2385 = vunpack.c.l.b16 %v2314
      %v2386 = vunpack.c.l.b16 %v2315
      %v2387 = vunpack.c.l.b16 %v2316
      %v2388 = vunpack.c.l.b16 %v2317
      %v2389 = vunpack.c.l.b16 %v2318
      %v2390 = vunpack.c.l.b16 %v2319
      %v2391 = vunpack.c.l.b16 %v2320
      %v2392 = vunpack.c.l.b16 %v2321
      %v2393 = vunpack.c.l.b16 %v2322
      %v2394 = vunpack.c.l.b16 %v2323
      %v2395 = vunpack.c.l.b16 %v2324
      %v2396 = vunpack.c.l.b16 %v2325
      %v2397 = vunpack.c.l.b16 %v2326
      %v2398 = vunpack.c.l.b16 %v2327
      %v2399 = vunpack.c.l.b16 %v2328
      %v2400 = vpack.c.b16 %v2369, %v2368
      %v2401 = vpack.c.b16 %v2371, %v2370
      %v2402 = vpack.c.b16 %v2373, %v2372
      %v2403 = vpack.c.b16 %v2375, %v2374
      %v2404 = vpack.c.b16 %v2377, %v2376
      %v2405 = vpack.c.b16 %v2379, %v2378
      %v2406 = vpack.c.b16 %v2381, %v2380
      %v2407 = vpack.c.b16 %v2383, %v2382
      %v2408 = vpack.c.b16 %v2385, %v2384
      %v2409 = vpack.c.b16 %v2387, %v2386
      %v2410 = vpack.c.b16 %v2389, %v2388
      %v2411 = vpack.c.b16 %v2391, %v2390
      %v2412 = vpack.c.b16 %v2393, %v2392
      %v2413 = vpack.c.b16 %v2395, %v2394
      %v2414 = vpack.c.b16 %v2397, %v2396
      %v2415 = vpack.c.b16 %v2399, %v2398
      %2432 = vmatprep.subr.bf16.mxu0 0
      %2433 = vmatpush1.bf16.msra.mxu0 %v2400
      %2434 = vmatprep.subr.bf16.mxu0 0
      %2435 = vmatpush1.bf16.msra.mxu0 %v2401
      %2436 = vmatprep.subr.bf16.mxu0 0
      %2437 = vmatpush1.bf16.msra.mxu0 %v2402
      %2438 = vmatprep.subr.bf16.mxu0 0
      %2439 = vmatpush1.bf16.msra.mxu0 %v2403
      %2440 = vmatprep.subr.bf16.mxu0 0
      %2441 = vmatpush1.bf16.msra.mxu0 %v2404
      %2442 = vmatprep.subr.bf16.mxu0 0
      %2443 = vmatpush1.bf16.msra.mxu0 %v2405
      %2444 = vmatprep.subr.bf16.mxu0 0
      %2445 = vmatpush1.bf16.msra.mxu0 %v2406
      %2446 = vmatprep.subr.bf16.mxu0 0
      %2447 = vmatpush1.bf16.msra.mxu0 %v2407
      %2448 = vmatprep.subr.bf16.mxu0 0
      %2449 = vmatpush1.bf16.msra.mxu0 %v2408
      %2450 = vmatprep.subr.bf16.mxu0 0
      %2451 = vmatpush1.bf16.msra.mxu0 %v2409
      %2452 = vmatprep.subr.bf16.mxu0 0
      %2453 = vmatpush1.bf16.msra.mxu0 %v2410
      %2454 = vmatprep.subr.bf16.mxu0 0
      %2455 = vmatpush1.bf16.msra.mxu0 %v2411
      %2456 = vmatprep.subr.bf16.mxu0 0
      %2457 = vmatpush1.bf16.msra.mxu0 %v2412
      %2458 = vmatprep.subr.bf16.mxu0 0
      %2459 = vmatpush1.bf16.msra.mxu0 %v2413
      %2460 = vmatprep.subr.bf16.mxu0 0
      %2461 = vmatpush1.bf16.msra.mxu0 %v2414
      %2462 = vmatprep.subr.bf16.mxu0 0
      %2463 = vmatpush1.bf16.msra.mxu0 %v2415
      %2464 = vmatprep.mubr.bf16.mxu0 %v2266
      %2465 = vmatmul.mubr.bf16.gmra.mrb[0].mxu0 %v2265
      %v2466 = vpop.f32.mrb[0].mxu0
      %v2467 = vadd.f32 %v2334, %v2466
      %v2468 = vpop.f32.mrb[0].mxu0
      %v2469 = vpop.f32.mrb[0].mxu0
      %v2470 = vadd.f32 %v2334, %v2469
      %v2471 = vpop.f32.mrb[0].mxu0
      %2472 = vmatprep.mubr.bf16.mxu0 %v2268
      %2473 = vmatmul.mubr.bf16.gmra.mrb[0].mxu0 %v2267
      %v2474 = vpop.f32.mrb[0].mxu0
      %v2475 = vadd.f32 %v2334, %v2474
      %v2476 = vpop.f32.mrb[0].mxu0
      %v2477 = vpop.f32.mrb[0].mxu0
      %v2478 = vadd.f32 %v2334, %v2477
      %v2479 = vpop.f32.mrb[0].mxu0
      %2480 = vmatprep.mubr.bf16.mxu0 %v2270
      %2481 = vmatmul.mubr.bf16.gmra.mrb[0].mxu0 %v2269
      %v2482 = vpop.f32.mrb[0].mxu0
      %v2483 = vadd.f32 %v2334, %v2482
      %v2484 = vpop.f32.mrb[0].mxu0
      %v2485 = vpop.f32.mrb[0].mxu0
      %v2486 = vadd.f32 %v2334, %v2485
      %v2487 = vpop.f32.mrb[0].mxu0
      %2488 = vmatprep.mubr.bf16.mxu0 %v2272
      %2489 = vmatmul.mubr.bf16.gmra.mrb[0].mxu0 %v2271
      %v2490 = vpop.f32.mrb[0].mxu0
      %v2491 = vadd.f32 %v2334, %v2490
      %v2492 = vpop.f32.mrb[0].mxu0
      %v2493 = vpop.f32.mrb[0].mxu0
      %v2494 = vadd.f32 %v2334, %v2493
      %v2495 = vpop.f32.mrb[0].mxu0
      %2496 = vmatprep.mubr.bf16.mxu0 %v2274
      %2497 = vmatmul.mubr.bf16.gmra.mrb[0].mxu0 %v2273
      %v2498 = vpop.f32.mrb[0].mxu0
      %v2499 = vadd.f32 %v2334, %v2498
      %v2500 = vpop.f32.mrb[0].mxu0
      %v2501 = vpop.f32.mrb[0].mxu0
      %v2502 = vadd.f32 %v2334, %v2501
      %v2503 = vpop.f32.mrb[0].mxu0
      %2504 = vmatprep.mubr.bf16.mxu0 %v2276
      %2505 = vmatmul.mubr.bf16.gmra.mrb[0].mxu0 %v2275
      %v2506 = vpop.f32.mrb[0].mxu0
      %v2507 = vadd.f32 %v2334, %v2506
      %v2508 = vpop.f32.mrb[0].mxu0
      %v2509 = vpop.f32.mrb[0].mxu0
      %v2510 = vadd.f32 %v2334, %v2509
      %v2511 = vpop.f32.mrb[0].mxu0
      %2512 = vmatprep.mubr.bf16.mxu0 %v2278
      %2513 = vmatmul.mubr.bf16.gmra.mrb[0].mxu0 %v2277
      %v2514 = vpop.f32.mrb[0].mxu0
      %v2515 = vadd.f32 %v2334, %v2514
      %v2516 = vpop.f32.mrb[0].mxu0
      %v2517 = vpop.f32.mrb[0].mxu0
      %v2518 = vadd.f32 %v2334, %v2517
      %v2519 = vpop.f32.mrb[0].mxu0
      %2520 = vmatprep.mubr.bf16.mxu0 %v2280
      %2521 = vmatmul.mubr.bf16.gmra.mrb[0].mxu0 %v2279
      %v2522 = vpop.f32.mrb[0].mxu0
      %v2523 = vadd.f32 %v2334, %v2522
      %v2524 = vpop.f32.mrb[0].mxu0
      %v2525 = vpop.f32.mrb[0].mxu0
      %v2526 = vadd.f32 %v2334, %v2525
      %v2527 = vpop.f32.mrb[0].mxu0
      %2528 = vmatprep.mubr.bf16.mxu0 %v2282
      %2529 = vmatmul.mubr.bf16.gmra.mrb[0].mxu0 %v2281
      %v2530 = vpop.f32.mrb[0].mxu0
      %v2531 = vadd.f32 %v2334, %v2530
      %v2532 = vpop.f32.mrb[0].mxu0
      %v2533 = vpop.f32.mrb[0].mxu0
      %v2534 = vadd.f32 %v2334, %v2533
      %v2535 = vpop.f32.mrb[0].mxu0
      %2536 = vmatprep.mubr.bf16.mxu0 %v2284
      %2537 = vmatmul.mubr.bf16.gmra.mrb[0].mxu0 %v2283
      %v2538 = vpop.f32.mrb[0].mxu0
      %v2539 = vadd.f32 %v2334, %v2538
      %v2540 = vpop.f32.mrb[0].mxu0
      %v2541 = vpop.f32.mrb[0].mxu0
      %v2542 = vadd.f32 %v2334, %v2541
      %v2543 = vpop.f32.mrb[0].mxu0
      %2544 = vmatprep.mubr.bf16.mxu0 %v2286
      %2545 = vmatmul.mubr.bf16.gmra.mrb[0].mxu0 %v2285
      %v2546 = vpop.f32.mrb[0].mxu0
      %v2547 = vadd.f32 %v2334, %v2546
      %v2548 = vpop.f32.mrb[0].mxu0
      %v2549 = vpop.f32.mrb[0].mxu0
      %v2550 = vadd.f32 %v2334, %v2549
      %v2551 = vpop.f32.mrb[0].mxu0
      %2552 = vmatprep.mubr.bf16.mxu0 %v2288
      %2553 = vmatmul.mubr.bf16.gmra.mrb[0].mxu0 %v2287
      %v2554 = vpop.f32.mrb[0].mxu0
      %v2555 = vadd.f32 %v2334, %v2554
      %v2556 = vpop.f32.mrb[0].mxu0
      %v2557 = vpop.f32.mrb[0].mxu0
      %v2558 = vadd.f32 %v2334, %v2557
      %v2559 = vpop.f32.mrb[0].mxu0
      %2560 = vmatprep.mubr.bf16.mxu0 %v2290
      %2561 = vmatmul.mubr.bf16.gmra.mrb[0].mxu0 %v2289
      %v2562 = vpop.f32.mrb[0].mxu0
      %v2563 = vadd.f32 %v2334, %v2562
      %v2564 = vpop.f32.mrb[0].mxu0
      %v2565 = vpop.f32.mrb[0].mxu0
      %v2566 = vadd.f32 %v2334, %v2565
      %v2567 = vpop.f32.mrb[0].mxu0
      %2568 = vmatprep.mubr.bf16.mxu0 %v2292
      %2569 = vmatmul.mubr.bf16.gmra.mrb[0].mxu0 %v2291
      %v2570 = vpop.f32.mrb[0].mxu0
      %v2571 = vadd.f32 %v2334, %v2570
      %v2572 = vpop.f32.mrb[0].mxu0
      %v2573 = vpop.f32.mrb[0].mxu0
      %v2574 = vadd.f32 %v2334, %v2573
      %v2575 = vpop.f32.mrb[0].mxu0
      %2576 = vmatprep.mubr.bf16.mxu0 %v2294
      %2577 = vmatmul.mubr.bf16.gmra.mrb[0].mxu0 %v2293
      %v2578 = vpop.f32.mrb[0].mxu0
      %v2579 = vadd.f32 %v2334, %v2578
      %v2580 = vpop.f32.mrb[0].mxu0
      %v2581 = vpop.f32.mrb[0].mxu0
      %v2582 = vadd.f32 %v2334, %v2581
      %v2583 = vpop.f32.mrb[0].mxu0
      %2584 = vmatprep.mubr.bf16.mxu0 %v2296
      %2585 = vmatmul.mubr.bf16.gmra.mrb[0].mxu0 %v2295
      %v2586 = vpop.f32.mrb[0].mxu0
      %v2587 = vadd.f32 %v2334, %v2586
      %v2588 = vpop.f32.mrb[0].mxu0
      %v2589 = vpop.f32.mrb[0].mxu0
      %v2590 = vadd.f32 %v2334, %v2589
      %v2591 = vpop.f32.mrb[0].mxu0
      %2592 = vdwg.mxu0
      %vm2593 = vcmask 113664
      %2594 = vst.msk [vmem:[%s388] sm:$0xff] %vm2593, %v2467
      %2595 = vst.msk [vmem:[%s388 + $0x8] sm:$0xff] %vm2593, %v2470
      %2596 = vst.msk [vmem:[%s388 + $0x10] sm:$0xff] %vm2593, %v2475
      %2597 = vst.msk [vmem:[%s388 + $0x18] sm:$0xff] %vm2593, %v2478
      %2598 = vst.msk [vmem:[%s388 + $0x20] sm:$0xff] %vm2593, %v2483
      %2599 = vst.msk [vmem:[%s388 + $0x28] sm:$0xff] %vm2593, %v2486
      %2600 = vst.msk [vmem:[%s388 + $0x30] sm:$0xff] %vm2593, %v2491
      %2601 = vst.msk [vmem:[%s388 + $0x38] sm:$0xff] %vm2593, %v2494
      %2602 = vst.msk [vmem:[%s388 + $0x40] sm:$0xff] %vm2593, %v2499
      %2603 = vst.msk [vmem:[%s388 + $0x48] sm:$0xff] %vm2593, %v2502
      %2604 = vst.msk [vmem:[%s388 + $0x50] sm:$0xff] %vm2593, %v2507
      %2605 = vst.msk [vmem:[%s388 + $0x58] sm:$0xff] %vm2593, %v2510
      %2606 = vst.msk [vmem:[%s388 + $0x60] sm:$0xff] %vm2593, %v2515
      %2607 = vst.msk [vmem:[%s388 + $0x68] sm:$0xff] %vm2593, %v2518
      %2608 = vst.msk [vmem:[%s388 + $0x70] sm:$0xff] %vm2593, %v2523
      %2609 = vst.msk [vmem:[%s388 + $0x78] sm:$0xff] %vm2593, %v2526
      %2610 = vst.msk [vmem:[%s388 + $0x80] sm:$0xff] %vm2593, %v2531
      %2611 = vst.msk [vmem:[%s388 + $0x88] sm:$0xff] %vm2593, %v2534
      %2612 = vst.msk [vmem:[%s388 + $0x90] sm:$0xff] %vm2593, %v2539
      %2613 = vst.msk [vmem:[%s388 + $0x98] sm:$0xff] %vm2593, %v2542
      %2614 = vst.msk [vmem:[%s388 + $0xa0] sm:$0xff] %vm2593, %v2547
      %2615 = vst.msk [vmem:[%s388 + $0xa8] sm:$0xff] %vm2593, %v2550
      %2616 = vst.msk [vmem:[%s388 + $0xb0] sm:$0xff] %vm2593, %v2555
      %2617 = vst.msk [vmem:[%s388 + $0xb8] sm:$0xff] %vm2593, %v2558
      %2618 = vst.msk [vmem:[%s388 + $0xc0] sm:$0xff] %vm2593, %v2563
      %2619 = vst.msk [vmem:[%s388 + $0xc8] sm:$0xff] %vm2593, %v2566
      %2620 = vst.msk [vmem:[%s388 + $0xd0] sm:$0xff] %vm2593, %v2571
      %2621 = vst.msk [vmem:[%s388 + $0xd8] sm:$0xff] %vm2593, %v2574
      %2622 = vst.msk [vmem:[%s388 + $0xe0] sm:$0xff] %vm2593, %v2579
      %2623 = vst.msk [vmem:[%s388 + $0xe8] sm:$0xff] %vm2593, %v2582
      %2624 = vst.msk [vmem:[%s388 + $0xf0] sm:$0xff] %vm2593, %v2587
      %2625 = vst.msk [vmem:[%s388 + $0xf8] sm:$0xff] %vm2593, %v2590
      %s2626 = smul.u32 32, %s22
      %p2627 = scmp.lt.s32.totalorder %s2626, 63
      %s2628 = scalar_select %p2627, %s2626, 63
      %s2629 = smul.addr %s2628, 8
      %s2630 = scalar_lea.vmem %s11, %s2629
      // Predicated region
      $region65: #{estimation_model_forward.1} parent=63 // pred_check
        %p2631 = pneg %p276
      $region66: #{estimation_model_forward.1} parent=63 // pred_check_branch
        %2633 = sbr.rel (%p2631) target = $region68
      $region67: #{estimation_model_forward.1} parent=63 // pred_region
        %s2634 = smul.u32 32, %s22
      $region68: #{estimation_model_forward.1} parent=63 // pred_fallthru
        _
    $region64: #{estimation_model_forward.1} parent=5 // pred_fallthru
      _
    %p2635 = scmp.le.s32.totalorder 2, %s17
    // Predicated region
    $region69: #{estimation_model_forward.1} parent=5 // pred_check
      %p2636 = pneg %p2635
    $region70: #{estimation_model_forward.1} parent=5 // pred_check_branch
      %2638 = sbr.rel (%p2636) target = $region72
    $region71: #{estimation_model_forward.1} parent=5 // pred_region
      %s2639 = ssub.s32 %s17, 2
      // Predicated region
      $region73: #{estimation_model_forward.1} parent=71 // pred_check
        %p2640 = pneg %p282
      $region74: #{estimation_model_forward.1} parent=71 // pred_check_branch
        %2642 = sbr.rel (%p2640) target = $region76
      $region75: #{estimation_model_forward.1} parent=71 // pred_region
        %s2643 = smul.u32 32, %s23
        %p2644 = scmp.lt.s32.totalorder %s2643, 63
        %s2645 = scalar_select %p2644, %s2643, 63
        %s2646 = smul.addr %s2645, 8
        %s2647 = scalar_lea.vmem %s11, %s2646
      $region76: #{estimation_model_forward.1} parent=71 // pred_fallthru
        _
    $region72: #{estimation_model_forward.1} parent=5 // pred_fallthru
      _
  $region6: #{estimation_model_forward.1} parent=0 // loop_footer
    %s21 = sadd.s32 1, %s17
  $region7: #{estimation_model_forward.1} parent=0 // loop_footer_branch
    %16 = sbr.rel target = $region3
  $region8: #{estimation_model_forward.1} parent=0 // loop_exit
    _

</llo_original>
